<compile_context>
chip_gen: v6e
topology: v6e:2x2x1
jax: 0.10.0
libtpu: 0.0.40
codegen_flags: <defaults>
</compile_context>

<pallas_src>
import functools

import jax
import jax.numpy as jnp
import numpy as np
from jax.experimental import pallas as pl
from jax.experimental.pallas import tpu as pltpu

LANE = 128  # lane-tile width; each gate group gets its own 128-lane group.


def rel_classify_kernel(xcat_ref, w_rnn_ref, bias_ref, wout_ref, probs_ref,
                        *, S, Hd, T):
    """One batch block (8 padded rows): biGRU + fused fc1/fc2 + softmax."""
    G = LANE
    BB = xcat_ref.shape[1] // S          # padded batch rows per block (8)
    H2 = xcat_ref.shape[2]               # 2*H = 4*Hd (fwd x | time-reversed x)

    # Packed weights (loaded once, all slice starts are tile-aligned).
    w_in = w_rnn_ref[0:H2, :]                          # (2H, 3*128) bf16
    whh = w_rnn_ref[H2:H2 + 2 * Hd, :]                 # (2Hd, 3*128) bf16
    b_in = bias_ref[0:1, :]                            # (1, 3*128) f32
    bhhn = jnp.broadcast_to(bias_ref[1:2, 0:2 * Hd], (BB, 2 * Hd))  # hoisted
    b2 = bias_ref[2:3, 0:T]                            # (1, T) f32 (fc2 + folded fc1 bias)

    xc = xcat_ref[0]                                   # (S*BB, 2H) bf16

    # Hoisted input projection: all timesteps, both directions, one matmul.
    # Column layout per 128-lane group g in {r, z, n}: [fwd | bwd | zero-pad].
    xg_all = jnp.dot(xc, w_in, preferred_element_type=jnp.float32) + b_in  # (S*BB, 3*128)

    h = jnp.zeros((BB, 2 * Hd), jnp.float32)           # [h_fwd | h_bwd]
    hs = []
    for t in range(S):
        # Row block t holds fwd gates for time t and bwd gates for time S-1-t
        # (the backward half of x was time-reversed in the wrapper).
        xg = xg_all[t * BB:(t + 1) * BB, :]            # aligned sublane slice
        if t == 0:
            hg = jnp.zeros((BB, 3 * G), jnp.float32)   # h0 == 0: skip the matmul
        else:
            hg = jnp.dot(h.astype(whh.dtype), whh,
                         preferred_element_type=jnp.float32)  # (BB, 3*128)
        # r (group 0) and z (group 1) for BOTH directions in one sigmoid push.
        rz = jax.nn.sigmoid(xg[:, :2 * G] + hg[:, :2 * G])
        r = rz[:, 0:2 * Hd]
        z = rz[:, G:G + 2 * Hd]
        # n (group 2), both directions in one tanh; bhh_n applied inside r*(.)
        n = jnp.tanh(xg[:, 2 * G:2 * G + 2 * Hd]
                     + r * (hg[:, 2 * G:2 * G + 2 * Hd] + bhhn))
        h = (1.0 - z) * n + z * h
        hs.append(h)

    # fc1 + fc2 fused into a single post-loop matmul against a precomputed
    # (S*2Hd, T) weight (accounts for the backward direction's time reversal).
    hcat = jnp.concatenate(hs, axis=1)                 # (BB, S*2Hd) f32
    logits = jnp.dot(hcat, wout_ref[...],
                     preferred_element_type=jnp.float32) + b2   # (BB, T)

    # softmax(dim=-1)
    m = jnp.max(logits, axis=-1, keepdims=True)
    e = jnp.exp(logits - m)
    probs_ref[...] = e * pl.reciprocal(jnp.sum(e, axis=-1, keepdims=True),
                                       approx=True)


def make_params(key, H, S, T):
    """Deterministic parameter init mirroring PyTorch default shapes/init."""
    Hd = H // 2
    keys = jax.random.split(key, 12)

    def u(k, shape, fan_in):
        bound = 1.0 / jnp.sqrt(jnp.float32(fan_in))
        return jax.random.uniform(k, shape, jnp.float32, -bound, bound)

    return dict(
        wih_f=u(keys[0], (3 * Hd, H), Hd),
        whh_f=u(keys[1], (3 * Hd, Hd), Hd),
        bih_f=u(keys[2], (3 * Hd,), Hd),
        bhh_f=u(keys[3], (3 * Hd,), Hd),
        wih_b=u(keys[4], (3 * Hd, H), Hd),
        whh_b=u(keys[5], (3 * Hd, Hd), Hd),
        bih_b=u(keys[6], (3 * Hd,), Hd),
        bhh_b=u(keys[7], (3 * Hd,), Hd),
        w1=u(keys[8], (1, H), H),          # nn.Linear(H, 1)
        b1=u(keys[9], (1,), H),
        w2=u(keys[10], (T, S), S),         # nn.Linear(max_sent_len, tagset_size)
        b2=u(keys[11], (T,), S),
    )


def prepare_params(params, S):
    """One-time packing of all weights (numpy, off the per-call jit path)."""
    p = {k: np.asarray(v, dtype=np.float32) for k, v in params.items()}
    Hd = p["whh_f"].shape[1]
    H = 2 * Hd
    T = p["w2"].shape[0]
    G = LANE

    def gates(w):  # PyTorch gate order: r, z, n
        return w[:Hd], w[Hd:2 * Hd], w[2 * Hd:]

    # w_in: rows 0..H-1 consume forward-time x, rows H..2H-1 consume the
    # time-reversed x; within each 128-lane gate group, direction d occupies
    # lanes [d*Hd, (d+1)*Hd).
    w_in = np.zeros((2 * H, 3 * G), np.float32)
    whh = np.zeros((2 * Hd, 3 * G), np.float32)
    bias = np.zeros((3, 3 * G), np.float32)
    for d, (wih, whh_p, bih, bhh) in enumerate(
            [(p["wih_f"], p["whh_f"], p["bih_f"], p["bhh_f"]),
             (p["wih_b"], p["whh_b"], p["bih_b"], p["bhh_b"])]):
        wir, wiz, win = gates(wih)       # each (Hd, H)
        whr, whz, whn = gates(whh_p)     # each (Hd, Hd)
        rx = slice(d * H, (d + 1) * H)   # xcat rows for this direction
        rh = slice(d * Hd, (d + 1) * Hd)  # h lanes for this direction
        for g, (wi, wh) in enumerate([(wir, whr), (wiz, whz), (win, whn)]):
            cols = slice(g * G + d * Hd, g * G + (d + 1) * Hd)
            w_in[rx, cols] = wi.T
            whh[rh, cols] = wh.T
        # r/z biases: bih+bhh pre-added; n: bih only (bhh_n stays inside r*(.)).
        bias[0, 0 * G + d * Hd:0 * G + (d + 1) * Hd] = bih[:Hd] + bhh[:Hd]
        bias[0, 1 * G + d * Hd:1 * G + (d + 1) * Hd] = bih[Hd:2 * Hd] + bhh[Hd:2 * Hd]
        bias[0, 2 * G + d * Hd:2 * G + (d + 1) * Hd] = bih[2 * Hd:]
        bias[1, d * Hd:(d + 1) * Hd] = bhh[2 * Hd:]

    w2t = p["w2"].T                                   # (S, T)
    # Fold fc1's bias through fc2: b2_eff = b2 + b1 * sum_t w2^T[t].
    bias[2, :T] = p["b2"] + p["b1"][0] * w2t.sum(axis=0)

    # Fused fc1*fc2 output weight for the loop-step-ordered h concatenation:
    # loop step t carries h_fwd(time t) and h_bwd(time S-1-t).
    w1_f = p["w1"][0, :Hd]
    w1_b = p["w1"][0, Hd:]
    wout = np.zeros((S * 2 * Hd, T), np.float32)
    for t in range(S):
        wout[t * 2 * Hd:t * 2 * Hd + Hd, :] = np.outer(w1_f, w2t[t])
        wout[t * 2 * Hd + Hd:(t + 1) * 2 * Hd, :] = np.outer(w1_b, w2t[S - 1 - t])

    return dict(
        w_rnn=jnp.asarray(np.concatenate([w_in, whh], axis=0), dtype=jnp.bfloat16),
        bias=jnp.asarray(bias, dtype=jnp.float32),
        wout=jnp.asarray(wout, dtype=jnp.float32),
    )


@jax.jit
def rel_classify_forward(x, packed):
    """x: (B, S, H) f32, packed: prepare_params() output -> probs (B, T) f32."""
    B, S, H = x.shape
    Hd = H // 2
    T = packed["wout"].shape[1]
    NB = -(-B // 8)            # batch blocks of 8 padded rows
    Bp = NB * 8

    # Per-call x prep only: seq-major, batch-padded, [fwd | time-reversed] on
    # lanes, grouped into batch blocks, bf16 for the MXU input projection.
    xt = jnp.transpose(x, (1, 0, 2))                       # (S, B, H)
    if Bp > B:
        xt = jnp.pad(xt, ((0, 0), (0, Bp - B), (0, 0)))    # (S, Bp, H)
    xcat = jnp.concatenate([xt, xt[::-1]], axis=-1)        # (S, Bp, 2H)
    xcat = (xcat.reshape(S, NB, 8, 2 * H)
                 .transpose(1, 0, 2, 3)
                 .reshape(NB, S * 8, 2 * H)
                 .astype(jnp.bfloat16))

    kernel = functools.partial(rel_classify_kernel, S=S, Hd=Hd, T=T)
    probs = pl.pallas_call(
        kernel,
        out_shape=jax.ShapeDtypeStruct((Bp, T), jnp.float32),
        grid=(NB,),
        in_specs=[
            pl.BlockSpec((1, S * 8, 2 * H), lambda i: (i, 0, 0)),       # xcat block
            pl.BlockSpec((2 * H + 2 * Hd, 3 * LANE), lambda i: (0, 0)),  # w_rnn (revisited)
            pl.BlockSpec((3, 3 * LANE), lambda i: (0, 0)),               # biases (revisited)
            pl.BlockSpec((S * 2 * Hd, T), lambda i: (0, 0)),             # fused fc1*fc2
        ],
        out_specs=pl.BlockSpec((8, T), lambda i: (i, 0)),
        compiler_params=pltpu.CompilerParams(dimension_semantics=("parallel",)),
    )(xcat, packed["w_rnn"], packed["bias"], packed["wout"])
    return probs[:B]


def reference_forward(x, params):
    """Pure-JAX f32 reference of the same forward tail (for validation)."""
    B, S, H = x.shape
    Hd = H // 2

    def gru_dir(xs, wih, whh, bih, bhh):
        h = jnp.zeros((B, Hd), jnp.float32)
        outs = []
        for t in range(xs.shape[0]):
            gi = xs[t] @ wih.T + bih
            gh = h @ whh.T + bhh
            r = jax.nn.sigmoid(gi[:, :Hd] + gh[:, :Hd])
            z = jax.nn.sigmoid(gi[:, Hd:2 * Hd] + gh[:, Hd:2 * Hd])
            n = jnp.tanh(gi[:, 2 * Hd:] + r * gh[:, 2 * Hd:])
            h = (1.0 - z) * n + z * h
            outs.append(h)
        return jnp.stack(outs)                              # (S, B, Hd)

    xs = jnp.transpose(x, (1, 0, 2))
    hf = gru_dir(xs, params["wih_f"], params["whh_f"], params["bih_f"], params["bhh_f"])
    hb = gru_dir(xs[::-1], params["wih_b"], params["whh_b"],
                 params["bih_b"], params["bhh_b"])[::-1]
    out = jnp.concatenate([hf, hb], axis=-1)                # (S, B, H)
    y = jnp.einsum("sbh,h->bs", out, params["w1"][0]) + params["b1"][0]
    logits = y @ params["w2"].T + params["b2"]
    return jax.nn.softmax(logits, axis=-1)


if __name__ == "__main__":
    # Small shapes consistent with the module:
    # batch=2, max_sent_len=8, hidden_size=32, tagset_size=5
    B, S, H, T = 2, 8, 32, 5

    key = jax.random.PRNGKey(0)
    k1, k2, k3, kp = jax.random.split(key, 4)
    x1 = jax.random.normal(k1, (B, S, H), jnp.float32)
    x2 = jax.random.normal(k2, (B, S, H), jnp.float32)
    y = jax.random.randint(k3, (B,), 0, T)

    params = make_params(kp, H, S, T)

    # TODO(synk): encoder1/encoder2/encoder (BE/DE) and training-mode dropout have
    # no available definitions; treated as identity, so the RNN input is x1.
    x = x1

    packed = prepare_params(params, S)          # one-time packing, off the hot path
    probs = rel_classify_forward(x, packed)
    jax.block_until_ready(probs)

    # Validate against the pure-JAX f32 reference (bf16 MXU operands + approx
    # softmax reciprocal => loose tolerance).
    ref = reference_forward(x, params)
    np.testing.assert_allclose(np.asarray(probs), np.asarray(ref), atol=3e-2, rtol=0.0)

    # Glue (plain JAX): accuracy + loss1 = CrossEntropyLoss applied to the
    # already-softmaxed output against the one-hot labels (as the module does).
    one_hot = jax.nn.one_hot(y, T, dtype=jnp.float32)
    log_sm = jax.nn.log_softmax(probs, axis=-1)
    loss1 = -jnp.mean(jnp.sum(one_hot * log_sm, axis=-1))
    acc = jnp.mean((jnp.argmax(probs, axis=-1) == y).astype(jnp.float32))
    loss = 0.8 * loss1  # TODO(synk): SoftenLoss (loss2) definition unavailable.
    jax.block_until_ready((loss, acc))

    print("KERNEL_OK")
</pallas_src>

<mosaic_0001>
module attributes {stable_mosaic.version = 11 : i64} {
  func.func @rel_classify_kernel(%arg0: i32, %arg1: memref<1x64x64xbf16, #tpu.memory_space<vmem>>, %arg2: memref<96x384xbf16, #tpu.memory_space<vmem>>, %arg3: memref<3x384xf32, #tpu.memory_space<vmem>>, %arg4: memref<256x5xf32, #tpu.memory_space<vmem>>, %arg5: memref<8x5xf32, #tpu.memory_space<vmem>>) attributes {dimension_semantics = [#tpu.dimension_semantics<parallel>], iteration_bounds = array<i64: 1>, scalar_prefetch = 0 : i64, scratch_operands = 0 : i64, tpu.core_type = #tpu.core_type<tc>, window_params = [{transform_indices = @transform_0, window_bounds = array<i64: 1, 64, 64>}, {pipeline_mode = #tpu.pipeline_mode<synchronous>, transform_indices = @transform_1, window_bounds = array<i64: 96, 384>}, {pipeline_mode = #tpu.pipeline_mode<synchronous>, transform_indices = @transform_2, window_bounds = array<i64: 3, 384>}, {pipeline_mode = #tpu.pipeline_mode<synchronous>, transform_indices = @transform_3, window_bounds = array<i64: 256, 5>}, {transform_indices = @transform_4, window_bounds = array<i64: 8, 5>}]} {
    %c0 = arith.constant 0 : index
    %c0_0 = arith.constant 0 : index
    %0 = vector.load %arg2[%c0, %c0_0] : memref<96x384xbf16, #tpu.memory_space<vmem>>, vector<64x384xbf16>
    %c64 = arith.constant 64 : index
    %c0_1 = arith.constant 0 : index
    %1 = vector.load %arg2[%c64, %c0_1] : memref<96x384xbf16, #tpu.memory_space<vmem>>, vector<32x384xbf16>
    %c0_2 = arith.constant 0 : index
    %c0_3 = arith.constant 0 : index
    %2 = vector.load %arg3[%c0_2, %c0_3] : memref<3x384xf32, #tpu.memory_space<vmem>>, vector<1x384xf32>
    %c1 = arith.constant 1 : index
    %c0_4 = arith.constant 0 : index
    %3 = vector.load %arg3[%c1, %c0_4] : memref<3x384xf32, #tpu.memory_space<vmem>>, vector<1x32xf32>
    %4 = vector.shape_cast %3 : vector<1x32xf32> to vector<1x32xf32>
    %5 = vector.broadcast %4 : vector<1x32xf32> to vector<8x32xf32>
    %c2 = arith.constant 2 : index
    %c0_5 = arith.constant 0 : index
    %6 = vector.load %arg3[%c2, %c0_5] : memref<3x384xf32, #tpu.memory_space<vmem>>, vector<1x5xf32>
    %c0_6 = arith.constant 0 : index
    %c0_7 = arith.constant 0 : index
    %c0_8 = arith.constant 0 : index
    %7 = vector.load %arg1[%c0_6, %c0_7, %c0_8] : memref<1x64x64xbf16, #tpu.memory_space<vmem>>, vector<1x64x64xbf16>
    %8 = vector.shape_cast %7 : vector<1x64x64xbf16> to vector<64x64xbf16>
    %cst = arith.constant dense<0.000000e+00> : vector<64x384xf32>
    %9 = tpu.matmul %8, %0, %cst {dimension_numbers = #tpu.dot_dimension_numbers<[1], [0], [0], [1], [0, 0, 1, 1], [], []>} : vector<64x64xbf16>, vector<64x384xbf16>, vector<64x384xf32> -> vector<64x384xf32>
    %10 = vector.broadcast %2 : vector<1x384xf32> to vector<64x384xf32>
    %11 = arith.addf %9, %10 : vector<64x384xf32>
    %cst_9 = arith.constant 0.000000e+00 : f32
    %12 = vector.broadcast %cst_9 : f32 to vector<8x32xf32>
    %13 = vector.extract_strided_slice %11 {offsets = [0, 0], sizes = [8, 384], strides = [1, 1]} : vector<64x384xf32> to vector<8x384xf32>
    %cst_10 = arith.constant 0.000000e+00 : f32
    %14 = vector.broadcast %cst_10 : f32 to vector<8x384xf32>
    %15 = vector.extract_strided_slice %13 {offsets = [0, 0], sizes = [8, 256], strides = [1, 1]} : vector<8x384xf32> to vector<8x256xf32>
    %16 = vector.extract_strided_slice %14 {offsets = [0, 0], sizes = [8, 256], strides = [1, 1]} : vector<8x384xf32> to vector<8x256xf32>
    %17 = arith.addf %15, %16 : vector<8x256xf32>
    %18 = arith.negf %17 : vector<8x256xf32>
    %19 = math.exp %18 : vector<8x256xf32>
    %cst_11 = arith.constant 1.000000e+00 : f32
    %20 = vector.broadcast %cst_11 : f32 to vector<8x256xf32>
    %21 = arith.addf %20, %19 : vector<8x256xf32>
    %22 = arith.divf %20, %21 : vector<8x256xf32>
    %23 = vector.extract_strided_slice %22 {offsets = [0, 0], sizes = [8, 32], strides = [1, 1]} : vector<8x256xf32> to vector<8x32xf32>
    %24 = vector.extract_strided_slice %22 {offsets = [0, 128], sizes = [8, 32], strides = [1, 1]} : vector<8x256xf32> to vector<8x32xf32>
    %25 = vector.extract_strided_slice %13 {offsets = [0, 256], sizes = [8, 32], strides = [1, 1]} : vector<8x384xf32> to vector<8x32xf32>
    %26 = vector.extract_strided_slice %14 {offsets = [0, 256], sizes = [8, 32], strides = [1, 1]} : vector<8x384xf32> to vector<8x32xf32>
    %27 = arith.addf %26, %5 : vector<8x32xf32>
    %28 = arith.mulf %23, %27 : vector<8x32xf32>
    %29 = arith.addf %25, %28 : vector<8x32xf32>
    %30 = math.tanh %29 : vector<8x32xf32>
    %cst_12 = arith.constant 1.000000e+00 : f32
    %31 = vector.broadcast %cst_12 : f32 to vector<8x32xf32>
    %32 = arith.subf %31, %24 : vector<8x32xf32>
    %33 = arith.mulf %32, %30 : vector<8x32xf32>
    %34 = arith.mulf %24, %12 : vector<8x32xf32>
    %35 = arith.addf %33, %34 : vector<8x32xf32>
    %36 = vector.extract_strided_slice %11 {offsets = [8, 0], sizes = [8, 384], strides = [1, 1]} : vector<64x384xf32> to vector<8x384xf32>
    %37 = arith.truncf %35 : vector<8x32xf32> to vector<8x32xbf16>
    %cst_13 = arith.constant dense<0.000000e+00> : vector<8x384xf32>
    %38 = tpu.matmul %37, %1, %cst_13 {dimension_numbers = #tpu.dot_dimension_numbers<[1], [0], [0], [1], [0, 0, 1, 1], [], []>} : vector<8x32xbf16>, vector<32x384xbf16>, vector<8x384xf32> -> vector<8x384xf32>
    %39 = vector.extract_strided_slice %36 {offsets = [0, 0], sizes = [8, 256], strides = [1, 1]} : vector<8x384xf32> to vector<8x256xf32>
    %40 = vector.extract_strided_slice %38 {offsets = [0, 0], sizes = [8, 256], strides = [1, 1]} : vector<8x384xf32> to vector<8x256xf32>
    %41 = arith.addf %39, %40 : vector<8x256xf32>
    %42 = arith.negf %41 : vector<8x256xf32>
    %43 = math.exp %42 : vector<8x256xf32>
    %cst_14 = arith.constant 1.000000e+00 : f32
    %44 = vector.broadcast %cst_14 : f32 to vector<8x256xf32>
    %45 = arith.addf %44, %43 : vector<8x256xf32>
    %46 = arith.divf %44, %45 : vector<8x256xf32>
    %47 = vector.extract_strided_slice %46 {offsets = [0, 0], sizes = [8, 32], strides = [1, 1]} : vector<8x256xf32> to vector<8x32xf32>
    %48 = vector.extract_strided_slice %46 {offsets = [0, 128], sizes = [8, 32], strides = [1, 1]} : vector<8x256xf32> to vector<8x32xf32>
    %49 = vector.extract_strided_slice %36 {offsets = [0, 256], sizes = [8, 32], strides = [1, 1]} : vector<8x384xf32> to vector<8x32xf32>
    %50 = vector.extract_strided_slice %38 {offsets = [0, 256], sizes = [8, 32], strides = [1, 1]} : vector<8x384xf32> to vector<8x32xf32>
    %51 = arith.addf %50, %5 : vector<8x32xf32>
    %52 = arith.mulf %47, %51 : vector<8x32xf32>
    %53 = arith.addf %49, %52 : vector<8x32xf32>
    %54 = math.tanh %53 : vector<8x32xf32>
    %cst_15 = arith.constant 1.000000e+00 : f32
    %55 = vector.broadcast %cst_15 : f32 to vector<8x32xf32>
    %56 = arith.subf %55, %48 : vector<8x32xf32>
    %57 = arith.mulf %56, %54 : vector<8x32xf32>
    %58 = arith.mulf %48, %35 : vector<8x32xf32>
    %59 = arith.addf %57, %58 : vector<8x32xf32>
    %60 = vector.extract_strided_slice %11 {offsets = [16, 0], sizes = [8, 384], strides = [1, 1]} : vector<64x384xf32> to vector<8x384xf32>
    %61 = arith.truncf %59 : vector<8x32xf32> to vector<8x32xbf16>
    %cst_16 = arith.constant dense<0.000000e+00> : vector<8x384xf32>
    %62 = tpu.matmul %61, %1, %cst_16 {dimension_numbers = #tpu.dot_dimension_numbers<[1], [0], [0], [1], [0, 0, 1, 1], [], []>} : vector<8x32xbf16>, vector<32x384xbf16>, vector<8x384xf32> -> vector<8x384xf32>
    %63 = vector.extract_strided_slice %60 {offsets = [0, 0], sizes = [8, 256], strides = [1, 1]} : vector<8x384xf32> to vector<8x256xf32>
    %64 = vector.extract_strided_slice %62 {offsets = [0, 0], sizes = [8, 256], strides = [1, 1]} : vector<8x384xf32> to vector<8x256xf32>
    %65 = arith.addf %63, %64 : vector<8x256xf32>
    %66 = arith.negf %65 : vector<8x256xf32>
    %67 = math.exp %66 : vector<8x256xf32>
    %cst_17 = arith.constant 1.000000e+00 : f32
    %68 = vector.broadcast %cst_17 : f32 to vector<8x256xf32>
    %69 = arith.addf %68, %67 : vector<8x256xf32>
    %70 = arith.divf %68, %69 : vector<8x256xf32>
    %71 = vector.extract_strided_slice %70 {offsets = [0, 0], sizes = [8, 32], strides = [1, 1]} : vector<8x256xf32> to vector<8x32xf32>
    %72 = vector.extract_strided_slice %70 {offsets = [0, 128], sizes = [8, 32], strides = [1, 1]} : vector<8x256xf32> to vector<8x32xf32>
    %73 = vector.extract_strided_slice %60 {offsets = [0, 256], sizes = [8, 32], strides = [1, 1]} : vector<8x384xf32> to vector<8x32xf32>
    %74 = vector.extract_strided_slice %62 {offsets = [0, 256], sizes = [8, 32], strides = [1, 1]} : vector<8x384xf32> to vector<8x32xf32>
    %75 = arith.addf %74, %5 : vector<8x32xf32>
    %76 = arith.mulf %71, %75 : vector<8x32xf32>
    %77 = arith.addf %73, %76 : vector<8x32xf32>
    %78 = math.tanh %77 : vector<8x32xf32>
    %cst_18 = arith.constant 1.000000e+00 : f32
    %79 = vector.broadcast %cst_18 : f32 to vector<8x32xf32>
    %80 = arith.subf %79, %72 : vector<8x32xf32>
    %81 = arith.mulf %80, %78 : vector<8x32xf32>
    %82 = arith.mulf %72, %59 : vector<8x32xf32>
    %83 = arith.addf %81, %82 : vector<8x32xf32>
    %84 = vector.extract_strided_slice %11 {offsets = [24, 0], sizes = [8, 384], strides = [1, 1]} : vector<64x384xf32> to vector<8x384xf32>
    %85 = arith.truncf %83 : vector<8x32xf32> to vector<8x32xbf16>
    %cst_19 = arith.constant dense<0.000000e+00> : vector<8x384xf32>
    %86 = tpu.matmul %85, %1, %cst_19 {dimension_numbers = #tpu.dot_dimension_numbers<[1], [0], [0], [1], [0, 0, 1, 1], [], []>} : vector<8x32xbf16>, vector<32x384xbf16>, vector<8x384xf32> -> vector<8x384xf32>
    %87 = vector.extract_strided_slice %84 {offsets = [0, 0], sizes = [8, 256], strides = [1, 1]} : vector<8x384xf32> to vector<8x256xf32>
    %88 = vector.extract_strided_slice %86 {offsets = [0, 0], sizes = [8, 256], strides = [1, 1]} : vector<8x384xf32> to vector<8x256xf32>
    %89 = arith.addf %87, %88 : vector<8x256xf32>
    %90 = arith.negf %89 : vector<8x256xf32>
    %91 = math.exp %90 : vector<8x256xf32>
    %cst_20 = arith.constant 1.000000e+00 : f32
    %92 = vector.broadcast %cst_20 : f32 to vector<8x256xf32>
    %93 = arith.addf %92, %91 : vector<8x256xf32>
    %94 = arith.divf %92, %93 : vector<8x256xf32>
    %95 = vector.extract_strided_slice %94 {offsets = [0, 0], sizes = [8, 32], strides = [1, 1]} : vector<8x256xf32> to vector<8x32xf32>
    %96 = vector.extract_strided_slice %94 {offsets = [0, 128], sizes = [8, 32], strides = [1, 1]} : vector<8x256xf32> to vector<8x32xf32>
    %97 = vector.extract_strided_slice %84 {offsets = [0, 256], sizes = [8, 32], strides = [1, 1]} : vector<8x384xf32> to vector<8x32xf32>
    %98 = vector.extract_strided_slice %86 {offsets = [0, 256], sizes = [8, 32], strides = [1, 1]} : vector<8x384xf32> to vector<8x32xf32>
    %99 = arith.addf %98, %5 : vector<8x32xf32>
    %100 = arith.mulf %95, %99 : vector<8x32xf32>
    %101 = arith.addf %97, %100 : vector<8x32xf32>
    %102 = math.tanh %101 : vector<8x32xf32>
    %cst_21 = arith.constant 1.000000e+00 : f32
    %103 = vector.broadcast %cst_21 : f32 to vector<8x32xf32>
    %104 = arith.subf %103, %96 : vector<8x32xf32>
    %105 = arith.mulf %104, %102 : vector<8x32xf32>
    %106 = arith.mulf %96, %83 : vector<8x32xf32>
    %107 = arith.addf %105, %106 : vector<8x32xf32>
    %108 = vector.extract_strided_slice %11 {offsets = [32, 0], sizes = [8, 384], strides = [1, 1]} : vector<64x384xf32> to vector<8x384xf32>
    %109 = arith.truncf %107 : vector<8x32xf32> to vector<8x32xbf16>
    %cst_22 = arith.constant dense<0.000000e+00> : vector<8x384xf32>
    %110 = tpu.matmul %109, %1, %cst_22 {dimension_numbers = #tpu.dot_dimension_numbers<[1], [0], [0], [1], [0, 0, 1, 1], [], []>} : vector<8x32xbf16>, vector<32x384xbf16>, vector<8x384xf32> -> vector<8x384xf32>
    %111 = vector.extract_strided_slice %108 {offsets = [0, 0], sizes = [8, 256], strides = [1, 1]} : vector<8x384xf32> to vector<8x256xf32>
    %112 = vector.extract_strided_slice %110 {offsets = [0, 0], sizes = [8, 256], strides = [1, 1]} : vector<8x384xf32> to vector<8x256xf32>
    %113 = arith.addf %111, %112 : vector<8x256xf32>
    %114 = arith.negf %113 : vector<8x256xf32>
    %115 = math.exp %114 : vector<8x256xf32>
    %cst_23 = arith.constant 1.000000e+00 : f32
    %116 = vector.broadcast %cst_23 : f32 to vector<8x256xf32>
    %117 = arith.addf %116, %115 : vector<8x256xf32>
    %118 = arith.divf %116, %117 : vector<8x256xf32>
    %119 = vector.extract_strided_slice %118 {offsets = [0, 0], sizes = [8, 32], strides = [1, 1]} : vector<8x256xf32> to vector<8x32xf32>
    %120 = vector.extract_strided_slice %118 {offsets = [0, 128], sizes = [8, 32], strides = [1, 1]} : vector<8x256xf32> to vector<8x32xf32>
    %121 = vector.extract_strided_slice %108 {offsets = [0, 256], sizes = [8, 32], strides = [1, 1]} : vector<8x384xf32> to vector<8x32xf32>
    %122 = vector.extract_strided_slice %110 {offsets = [0, 256], sizes = [8, 32], strides = [1, 1]} : vector<8x384xf32> to vector<8x32xf32>
    %123 = arith.addf %122, %5 : vector<8x32xf32>
    %124 = arith.mulf %119, %123 : vector<8x32xf32>
    %125 = arith.addf %121, %124 : vector<8x32xf32>
    %126 = math.tanh %125 : vector<8x32xf32>
    %cst_24 = arith.constant 1.000000e+00 : f32
    %127 = vector.broadcast %cst_24 : f32 to vector<8x32xf32>
    %128 = arith.subf %127, %120 : vector<8x32xf32>
    %129 = arith.mulf %128, %126 : vector<8x32xf32>
    %130 = arith.mulf %120, %107 : vector<8x32xf32>
    %131 = arith.addf %129, %130 : vector<8x32xf32>
    %132 = vector.extract_strided_slice %11 {offsets = [40, 0], sizes = [8, 384], strides = [1, 1]} : vector<64x384xf32> to vector<8x384xf32>
    %133 = arith.truncf %131 : vector<8x32xf32> to vector<8x32xbf16>
    %cst_25 = arith.constant dense<0.000000e+00> : vector<8x384xf32>
    %134 = tpu.matmul %133, %1, %cst_25 {dimension_numbers = #tpu.dot_dimension_numbers<[1], [0], [0], [1], [0, 0, 1, 1], [], []>} : vector<8x32xbf16>, vector<32x384xbf16>, vector<8x384xf32> -> vector<8x384xf32>
    %135 = vector.extract_strided_slice %132 {offsets = [0, 0], sizes = [8, 256], strides = [1, 1]} : vector<8x384xf32> to vector<8x256xf32>
    %136 = vector.extract_strided_slice %134 {offsets = [0, 0], sizes = [8, 256], strides = [1, 1]} : vector<8x384xf32> to vector<8x256xf32>
    %137 = arith.addf %135, %136 : vector<8x256xf32>
    %138 = arith.negf %137 : vector<8x256xf32>
    %139 = math.exp %138 : vector<8x256xf32>
    %cst_26 = arith.constant 1.000000e+00 : f32
    %140 = vector.broadcast %cst_26 : f32 to vector<8x256xf32>
    %141 = arith.addf %140, %139 : vector<8x256xf32>
    %142 = arith.divf %140, %141 : vector<8x256xf32>
    %143 = vector.extract_strided_slice %142 {offsets = [0, 0], sizes = [8, 32], strides = [1, 1]} : vector<8x256xf32> to vector<8x32xf32>
    %144 = vector.extract_strided_slice %142 {offsets = [0, 128], sizes = [8, 32], strides = [1, 1]} : vector<8x256xf32> to vector<8x32xf32>
    %145 = vector.extract_strided_slice %132 {offsets = [0, 256], sizes = [8, 32], strides = [1, 1]} : vector<8x384xf32> to vector<8x32xf32>
    %146 = vector.extract_strided_slice %134 {offsets = [0, 256], sizes = [8, 32], strides = [1, 1]} : vector<8x384xf32> to vector<8x32xf32>
    %147 = arith.addf %146, %5 : vector<8x32xf32>
    %148 = arith.mulf %143, %147 : vector<8x32xf32>
    %149 = arith.addf %145, %148 : vector<8x32xf32>
    %150 = math.tanh %149 : vector<8x32xf32>
    %cst_27 = arith.constant 1.000000e+00 : f32
    %151 = vector.broadcast %cst_27 : f32 to vector<8x32xf32>
    %152 = arith.subf %151, %144 : vector<8x32xf32>
    %153 = arith.mulf %152, %150 : vector<8x32xf32>
    %154 = arith.mulf %144, %131 : vector<8x32xf32>
    %155 = arith.addf %153, %154 : vector<8x32xf32>
    %156 = vector.extract_strided_slice %11 {offsets = [48, 0], sizes = [8, 384], strides = [1, 1]} : vector<64x384xf32> to vector<8x384xf32>
    %157 = arith.truncf %155 : vector<8x32xf32> to vector<8x32xbf16>
    %cst_28 = arith.constant dense<0.000000e+00> : vector<8x384xf32>
    %158 = tpu.matmul %157, %1, %cst_28 {dimension_numbers = #tpu.dot_dimension_numbers<[1], [0], [0], [1], [0, 0, 1, 1], [], []>} : vector<8x32xbf16>, vector<32x384xbf16>, vector<8x384xf32> -> vector<8x384xf32>
    %159 = vector.extract_strided_slice %156 {offsets = [0, 0], sizes = [8, 256], strides = [1, 1]} : vector<8x384xf32> to vector<8x256xf32>
    %160 = vector.extract_strided_slice %158 {offsets = [0, 0], sizes = [8, 256], strides = [1, 1]} : vector<8x384xf32> to vector<8x256xf32>
    %161 = arith.addf %159, %160 : vector<8x256xf32>
    %162 = arith.negf %161 : vector<8x256xf32>
    %163 = math.exp %162 : vector<8x256xf32>
    %cst_29 = arith.constant 1.000000e+00 : f32
    %164 = vector.broadcast %cst_29 : f32 to vector<8x256xf32>
    %165 = arith.addf %164, %163 : vector<8x256xf32>
    %166 = arith.divf %164, %165 : vector<8x256xf32>
    %167 = vector.extract_strided_slice %166 {offsets = [0, 0], sizes = [8, 32], strides = [1, 1]} : vector<8x256xf32> to vector<8x32xf32>
    %168 = vector.extract_strided_slice %166 {offsets = [0, 128], sizes = [8, 32], strides = [1, 1]} : vector<8x256xf32> to vector<8x32xf32>
    %169 = vector.extract_strided_slice %156 {offsets = [0, 256], sizes = [8, 32], strides = [1, 1]} : vector<8x384xf32> to vector<8x32xf32>
    %170 = vector.extract_strided_slice %158 {offsets = [0, 256], sizes = [8, 32], strides = [1, 1]} : vector<8x384xf32> to vector<8x32xf32>
    %171 = arith.addf %170, %5 : vector<8x32xf32>
    %172 = arith.mulf %167, %171 : vector<8x32xf32>
    %173 = arith.addf %169, %172 : vector<8x32xf32>
    %174 = math.tanh %173 : vector<8x32xf32>
    %cst_30 = arith.constant 1.000000e+00 : f32
    %175 = vector.broadcast %cst_30 : f32 to vector<8x32xf32>
    %176 = arith.subf %175, %168 : vector<8x32xf32>
    %177 = arith.mulf %176, %174 : vector<8x32xf32>
    %178 = arith.mulf %168, %155 : vector<8x32xf32>
    %179 = arith.addf %177, %178 : vector<8x32xf32>
    %180 = vector.extract_strided_slice %11 {offsets = [56, 0], sizes = [8, 384], strides = [1, 1]} : vector<64x384xf32> to vector<8x384xf32>
    %181 = arith.truncf %179 : vector<8x32xf32> to vector<8x32xbf16>
    %cst_31 = arith.constant dense<0.000000e+00> : vector<8x384xf32>
    %182 = tpu.matmul %181, %1, %cst_31 {dimension_numbers = #tpu.dot_dimension_numbers<[1], [0], [0], [1], [0, 0, 1, 1], [], []>} : vector<8x32xbf16>, vector<32x384xbf16>, vector<8x384xf32> -> vector<8x384xf32>
    %183 = vector.extract_strided_slice %180 {offsets = [0, 0], sizes = [8, 256], strides = [1, 1]} : vector<8x384xf32> to vector<8x256xf32>
    %184 = vector.extract_strided_slice %182 {offsets = [0, 0], sizes = [8, 256], strides = [1, 1]} : vector<8x384xf32> to vector<8x256xf32>
    %185 = arith.addf %183, %184 : vector<8x256xf32>
    %186 = arith.negf %185 : vector<8x256xf32>
    %187 = math.exp %186 : vector<8x256xf32>
    %cst_32 = arith.constant 1.000000e+00 : f32
    %188 = vector.broadcast %cst_32 : f32 to vector<8x256xf32>
    %189 = arith.addf %188, %187 : vector<8x256xf32>
    %190 = arith.divf %188, %189 : vector<8x256xf32>
    %191 = vector.extract_strided_slice %190 {offsets = [0, 0], sizes = [8, 32], strides = [1, 1]} : vector<8x256xf32> to vector<8x32xf32>
    %192 = vector.extract_strided_slice %190 {offsets = [0, 128], sizes = [8, 32], strides = [1, 1]} : vector<8x256xf32> to vector<8x32xf32>
    %193 = vector.extract_strided_slice %180 {offsets = [0, 256], sizes = [8, 32], strides = [1, 1]} : vector<8x384xf32> to vector<8x32xf32>
    %194 = vector.extract_strided_slice %182 {offsets = [0, 256], sizes = [8, 32], strides = [1, 1]} : vector<8x384xf32> to vector<8x32xf32>
    %195 = arith.addf %194, %5 : vector<8x32xf32>
    %196 = arith.mulf %191, %195 : vector<8x32xf32>
    %197 = arith.addf %193, %196 : vector<8x32xf32>
    %198 = math.tanh %197 : vector<8x32xf32>
    %cst_33 = arith.constant 1.000000e+00 : f32
    %199 = vector.broadcast %cst_33 : f32 to vector<8x32xf32>
    %200 = arith.subf %199, %192 : vector<8x32xf32>
    %201 = arith.mulf %200, %198 : vector<8x32xf32>
    %202 = arith.mulf %192, %179 : vector<8x32xf32>
    %203 = arith.addf %201, %202 : vector<8x32xf32>
    %204 = tpu.concatenate %35, %59, %83, %107, %131, %155, %179, %203 in 1 : vector<8x32xf32>, vector<8x32xf32>, vector<8x32xf32>, vector<8x32xf32>, vector<8x32xf32>, vector<8x32xf32>, vector<8x32xf32>, vector<8x32xf32> -> vector<8x256xf32>
    %c0_34 = arith.constant 0 : index
    %c0_35 = arith.constant 0 : index
    %205 = vector.load %arg4[%c0_34, %c0_35] : memref<256x5xf32, #tpu.memory_space<vmem>>, vector<256x5xf32>
    %cst_36 = arith.constant dense<0.000000e+00> : vector<8x5xf32>
    %206 = tpu.matmul %204, %205, %cst_36 {dimension_numbers = #tpu.dot_dimension_numbers<[1], [0], [0], [1], [0, 0, 1, 1], [], []>} : vector<8x256xf32>, vector<256x5xf32>, vector<8x5xf32> -> vector<8x5xf32>
    %207 = vector.broadcast %6 : vector<1x5xf32> to vector<8x5xf32>
    %208 = arith.addf %206, %207 : vector<8x5xf32>
    %cst_37 = arith.constant dense<0xFF800000> : vector<8xf32>
    %209 = vector.multi_reduction <maximumf>, %208, %cst_37 [1] : vector<8x5xf32> to vector<8xf32>
    %210 = vector.shape_cast %209 : vector<8xf32> to vector<8x1xf32>
    %211 = vector.broadcast %210 : vector<8x1xf32> to vector<8x5xf32>
    %212 = arith.subf %208, %211 : vector<8x5xf32>
    %213 = math.exp %212 : vector<8x5xf32>
    %cst_38 = arith.constant dense<0.000000e+00> : vector<8xf32>
    %214 = vector.multi_reduction <add>, %213, %cst_38 [1] : vector<8x5xf32> to vector<8xf32>
    %215 = vector.shape_cast %214 : vector<8xf32> to vector<8x1xf32>
    %216 = tpu.reciprocal %215 {approx = true} : vector<8x1xf32> -> vector<8x1xf32>
    %217 = vector.broadcast %216 : vector<8x1xf32> to vector<8x5xf32>
    %218 = arith.mulf %213, %217 : vector<8x5xf32>
    %c0_39 = arith.constant 0 : index
    %c0_40 = arith.constant 0 : index
    %219 = vector.load %arg5[%c0_39, %c0_40] : memref<8x5xf32, #tpu.memory_space<vmem>>, vector<8x5xf32>
    tpu.vector_store %arg5[%c0_39, %c0_40], %218 {strides = array<i32>} : memref<8x5xf32, #tpu.memory_space<vmem>>, vector<8x5xf32>,
    return
  }
  func.func @transform_0(%arg0: i32) -> (i32, i32, i32) {
    %c0_i32 = arith.constant 0 : i32
    %c0_i32_0 = arith.constant 0 : i32
    %c0_i32_1 = arith.constant 0 : i32
    return %arg0, %c0_i32, %c0_i32_0 : i32, i32, i32
  }
  func.func @transform_1(%arg0: i32) -> (i32, i32) {
    %c0_i32 = arith.constant 0 : i32
    %c0_i32_0 = arith.constant 0 : i32
    %c0_i32_1 = arith.constant 0 : i32
    return %c0_i32, %c0_i32_0 : i32, i32
  }
  func.func @transform_2(%arg0: i32) -> (i32, i32) {
    %c0_i32 = arith.constant 0 : i32
    %c0_i32_0 = arith.constant 0 : i32
    %c0_i32_1 = arith.constant 0 : i32
    return %c0_i32, %c0_i32_0 : i32, i32
  }
  func.func @transform_3(%arg0: i32) -> (i32, i32) {
    %c0_i32 = arith.constant 0 : i32
    %c0_i32_0 = arith.constant 0 : i32
    %c0_i32_1 = arith.constant 0 : i32
    return %c0_i32, %c0_i32_0 : i32, i32
  }
  func.func @transform_4(%arg0: i32) -> (i32, i32) {
    %c0_i32 = arith.constant 0 : i32
    %c0_i32_0 = arith.constant 0 : i32
    return %arg0, %c0_i32 : i32, i32
  }
}

</mosaic_0001>

<llo_original>
// kernel: rel_classify_forward.1
$region0: #{rel_classify_forward.1}
  #allocation0 [shape = 'u32[]', space=smem, size = 0x4, offset = 0x4, fixed_abs, tag = 'smem constant byte address 0x4 - core index']
  #allocation1 [shape = 'u32[144,128]{1,0:T(1,128)}', space=vmem, size = 0x12000, scoped, tag = 'internal scratch']
  %s0 = inlined_call_operand.vmem [shape: bf16[1,64,64], index: 0, kind: input, shape index: {}]
  %s1 = inlined_call_operand.vmem [shape: bf16[96,384], index: 1, kind: input, shape index: {}]
  %s2 = inlined_call_operand.vmem [shape: f32[3,384], index: 2, kind: input, shape index: {}]
  %s3 = inlined_call_operand.vmem [shape: f32[256,5], index: 3, kind: input, shape index: {}]
  %s4 = inlined_call_operand.vmem [shape: f32[8,5], index: 4, kind: output, shape index: {}]
  %s5 = sld [smem:[#allocation0]]
  $region26: #{rel_classify_forward.1} parent=0
    _
  %s7 = ssub.s32 1, %s5
  %s8 = scalar_select 0, %s7, %s5
  // Predicated region
  $region2: #{rel_classify_forward.1} parent=0 // pred_check
    _
  $region3: #{rel_classify_forward.1} parent=0 // pred_check_branch
    %10 = sbr.rel (0) target = $region5
  $region4: #{rel_classify_forward.1} parent=0 // pred_region
    _
  $region5: #{rel_classify_forward.1} parent=0 // pred_fallthru
    _
  // Predicated region
  $region6: #{rel_classify_forward.1} parent=0 // pred_check
    _
  $region7: #{rel_classify_forward.1} parent=0 // pred_check_branch
    %12 = sbr.rel (0) target = $region9
  $region8: #{rel_classify_forward.1} parent=0 // pred_region
    _
  $region9: #{rel_classify_forward.1} parent=0 // pred_fallthru
    _
  // Predicated region
  $region10: #{rel_classify_forward.1} parent=0 // pred_check
    _
  $region11: #{rel_classify_forward.1} parent=0 // pred_check_branch
    %14 = sbr.rel (0) target = $region13
  $region12: #{rel_classify_forward.1} parent=0 // pred_region
    _
  $region13: #{rel_classify_forward.1} parent=0 // pred_fallthru
    _
  // Predicated region
  $region14: #{rel_classify_forward.1} parent=0 // pred_check
    _
  $region15: #{rel_classify_forward.1} parent=0 // pred_check_branch
    %16 = sbr.rel (0) target = $region17
  $region16: #{rel_classify_forward.1} parent=0 // pred_region
    _
  $region17: #{rel_classify_forward.1} parent=0 // pred_fallthru
    _
  %v18 = vld [vmem:[%s1] sm:$0xff]
  %v19 = vld [vmem:[%s1 + $0x8] sm:$0xf]
  %v20 = vld [vmem:[%s1 + $0xc] sm:$0xff]
  %v21 = vld [vmem:[%s1 + $0x14] sm:$0xf]
  %v22 = vld [vmem:[%s1 + $0x18] sm:$0xff]
  %v23 = vld [vmem:[%s1 + $0x20] sm:$0xf]
  %v24 = vld [vmem:[%s1 + $0x24] sm:$0xff]
  %v25 = vld [vmem:[%s1 + $0x2c] sm:$0xf]
  %v26 = vld [vmem:[%s1 + $0x30] sm:$0xff]
  %v27 = vld [vmem:[%s1 + $0x38] sm:$0xf]
  %v28 = vld [vmem:[%s1 + $0x3c] sm:$0xff]
  %v29 = vld [vmem:[%s1 + $0x44] sm:$0xf]
  %v30 = vld [vmem:[%s1 + $0x48] sm:$0xff]
  %v31 = vld [vmem:[%s1 + $0x50] sm:$0xf]
  %v32 = vld [vmem:[%s1 + $0x54] sm:$0xff]
  %v33 = vld [vmem:[%s1 + $0x5c] sm:$0xf]
  %v34 = vld [vmem:[%s1 + $0x60] sm:$0xff]
  %v35 = vld [vmem:[%s1 + $0x68] sm:$0xf]
  %v36 = vld [vmem:[%s1 + $0x6c] sm:$0xff]
  %v37 = vld [vmem:[%s1 + $0x74] sm:$0xf]
  %v38 = vld [vmem:[%s1 + $0x78] sm:$0xff]
  %v39 = vld [vmem:[%s1 + $0x80] sm:$0xf]
  %v40 = vld [vmem:[%s1 + $0x84] sm:$0xff]
  %v41 = vld [vmem:[%s1 + $0x8c] sm:$0xf]
  %v42 = vld [vmem:[%s2] ss:$4 sm:$0x7]
  %v43 = vld [vmem:[%s2 + $0x1] sm:$0x1]
  %v44 = vlaneseq
  %v45 = vshrl.u32 %v44, 7
  %v46 = vsub.s32 0, %v45
  %v47 = vrot.slane %v43, %v46
  %v48 = vld [vmem:[%s2 + $0x2] sm:$0x1]
  %v49 = vld [vmem:[%s0] sm:$0xf]
  %v50 = vld [vmem:[%s0 + $0x4] sm:$0xf]
  %v51 = vld [vmem:[%s0 + $0x8] sm:$0xf]
  %v52 = vld [vmem:[%s0 + $0xc] sm:$0xf]
  %v53 = vld [vmem:[%s0 + $0x10] sm:$0xf]
  %v54 = vld [vmem:[%s0 + $0x14] sm:$0xf]
  %v55 = vld [vmem:[%s0 + $0x18] sm:$0xf]
  %v56 = vld [vmem:[%s0 + $0x1c] sm:$0xf]
  %v58 = vlaneseq
  %v59 = vshrl.u32 %v58, 7
  %v60 = vsub.s32 0, %v59
  %v61 = vrot.slane %v42, %v60
  %v62 = vlaneseq
  %v63 = vshrl.u32 %v62, 7
  %v64 = vsub.s32 1, %v63
  %v65 = vrot.slane %v42, %v64
  %v66 = vlaneseq
  %v67 = vshrl.u32 %v66, 7
  %v68 = vsub.s32 2, %v67
  %v69 = vrot.slane %v42, %v68
  %v81 = vunpack.c.l.b16 %v49
  %v82 = vunpack.c.l.b16 %v50
  %v83 = vunpack.c.l.b16 %v51
  %v84 = vunpack.c.l.b16 %v52
  %v85 = vunpack.c.l.b16 %v53
  %v86 = vunpack.c.l.b16 %v54
  %v87 = vunpack.c.l.b16 %v55
  %v88 = vunpack.c.l.b16 %v56
  %v89 = vpack.c.b16 %v82, %v81
  %v90 = vpack.c.b16 %v84, %v83
  %v91 = vpack.c.b16 %v86, %v85
  %v92 = vpack.c.b16 %v88, %v87
  %v109 = vunpack.c.l.b16 %v18
  %v110 = vunpack.c.h.b16 %v18
  %v111 = vunpack.c.l.b16 %v19
  %v112 = vunpack.c.l.b16 %v20
  %v113 = vunpack.c.h.b16 %v20
  %v114 = vunpack.c.l.b16 %v21
  %v115 = vunpack.c.l.b16 %v22
  %v116 = vunpack.c.h.b16 %v22
  %v117 = vunpack.c.l.b16 %v23
  %v118 = vunpack.c.l.b16 %v24
  %v119 = vunpack.c.h.b16 %v24
  %v120 = vunpack.c.l.b16 %v25
  %v121 = vunpack.c.l.b16 %v26
  %v122 = vunpack.c.h.b16 %v26
  %v123 = vunpack.c.l.b16 %v27
  %v124 = vunpack.c.l.b16 %v28
  %v125 = vunpack.c.h.b16 %v28
  %v126 = vunpack.c.l.b16 %v29
  %v127 = vunpack.c.l.b16 %v30
  %v128 = vunpack.c.h.b16 %v30
  %v129 = vunpack.c.l.b16 %v31
  %v130 = vunpack.c.l.b16 %v32
  %v131 = vunpack.c.h.b16 %v32
  %v132 = vunpack.c.l.b16 %v33
  %v133 = vpack.c.b16 %v112, %v109
  %v134 = vpack.c.b16 %v113, %v110
  %v135 = vpack.c.b16 %v114, %v111
  %v136 = vpack.c.b16 %v118, %v115
  %v137 = vpack.c.b16 %v119, %v116
  %v138 = vpack.c.b16 %v120, %v117
  %v139 = vpack.c.b16 %v124, %v121
  %v140 = vpack.c.b16 %v125, %v122
  %v141 = vpack.c.b16 %v126, %v123
  %v142 = vpack.c.b16 %v130, %v127
  %v143 = vpack.c.b16 %v131, %v128
  %v144 = vpack.c.b16 %v132, %v129
  %vm157 = vcmask 523264
  %v159 = vsel %vm157, %v89, 0
  %v162 = vsel %vm157, %v90, 0
  %v165 = vsel %vm157, %v91, 0
  %v168 = vsel %vm157, %v92, 0
  %170 = vmatprep.subr.bf16.mxu0 0
  %171 = vmatpush1.bf16.msra.mxu0 0
  %172 = vmatprep.subr.bf16.mxu0 0
  %173 = vmatpush1.bf16.msra.mxu0 0
  %174 = vmatprep.subr.bf16.mxu0 0
  %175 = vmatpush1.bf16.msra.mxu0 0
  %176 = vmatprep.subr.bf16.mxu0 0
  %177 = vmatpush1.bf16.msra.mxu0 0
  %178 = vmatprep.subr.bf16.mxu0 %v143
  %179 = vmatpush1.bf16.msra.mxu0 %v142
  %180 = vmatprep.subr.bf16.mxu0 %v140
  %181 = vmatpush1.bf16.msra.mxu0 %v139
  %182 = vmatprep.subr.bf16.mxu0 %v137
  %183 = vmatpush1.bf16.msra.mxu0 %v136
  %184 = vmatprep.subr.bf16.mxu0 %v134
  %185 = vmatpush1.bf16.msra.mxu0 %v133
  %186 = vmatprep.subr.bf16.mxu0 0
  %187 = vmatpush2.bf16.msra.mxu0 0
  %188 = vmatprep.subr.bf16.mxu0 0
  %189 = vmatpush2.bf16.msra.mxu0 0
  %190 = vmatprep.subr.bf16.mxu0 0
  %191 = vmatpush2.bf16.msra.mxu0 0
  %192 = vmatprep.subr.bf16.mxu0 0
  %193 = vmatpush2.bf16.msra.mxu0 0
  %194 = vmatprep.subr.bf16.mxu0 0
  %195 = vmatpush2.bf16.msra.mxu0 0
  %196 = vmatprep.subr.bf16.mxu0 0
  %197 = vmatpush2.bf16.msra.mxu0 0
  %198 = vmatprep.subr.bf16.mxu0 0
  %199 = vmatpush2.bf16.msra.mxu0 0
  %200 = vmatprep.subr.bf16.mxu0 0
  %201 = vmatpush2.bf16.msra.mxu0 0
  %202 = vmatprep.mubr.bf16.mxu0 0
  %203 = vmatmul.mubr.bf16.gmra.mxu0 %v159
  %v204 = vpop.f32.mrf.mxu0
  %v205 = vadd.f32 %v61, %v204
  %v206 = vpop.f32.mrf.mxu0
  %v207 = vadd.f32 %v65, %v206
  %v208 = vpop.f32.mrf.mxu0
  %v209 = vadd.f32 %v61, %v208
  %v210 = vpop.f32.mrf.mxu0
  %v211 = vadd.f32 %v65, %v210
  %212 = vmatprep.mubr.bf16.mxu0 0
  %213 = vmatmul.mubr.bf16.gmra.mxu0 %v162
  %v214 = vpop.f32.mrf.mxu0
  %v215 = vadd.f32 %v61, %v214
  %v216 = vpop.f32.mrf.mxu0
  %v217 = vadd.f32 %v65, %v216
  %v218 = vpop.f32.mrf.mxu0
  %v219 = vadd.f32 %v61, %v218
  %v220 = vpop.f32.mrf.mxu0
  %v221 = vadd.f32 %v65, %v220
  %222 = vmatprep.mubr.bf16.mxu0 0
  %223 = vmatmul.mubr.bf16.gmra.mxu0 %v165
  %v224 = vpop.f32.mrf.mxu0
  %v225 = vadd.f32 %v61, %v224
  %v226 = vpop.f32.mrf.mxu0
  %v227 = vadd.f32 %v65, %v226
  %v228 = vpop.f32.mrf.mxu0
  %v229 = vadd.f32 %v61, %v228
  %v230 = vpop.f32.mrf.mxu0
  %v231 = vadd.f32 %v65, %v230
  %232 = vmatprep.mubr.bf16.mxu0 0
  %233 = vmatmul.mubr.bf16.gmra.mxu0 %v168
  %v234 = vpop.f32.mrf.mxu0
  %v235 = vadd.f32 %v61, %v234
  %v236 = vpop.f32.mrf.mxu0
  %v237 = vadd.f32 %v65, %v236
  %v238 = vpop.f32.mrf.mxu0
  %v239 = vadd.f32 %v61, %v238
  %v240 = vpop.f32.mrf.mxu0
  %v241 = vadd.f32 %v65, %v240
  %242 = vdwg.mxu0
  %243 = vmatprep.subr.bf16.mxu0 0
  %244 = vmatpush1.bf16.msra.mxu0 0
  %245 = vmatprep.subr.bf16.mxu0 0
  %246 = vmatpush1.bf16.msra.mxu0 0
  %247 = vmatprep.subr.bf16.mxu0 0
  %248 = vmatpush1.bf16.msra.mxu0 0
  %249 = vmatprep.subr.bf16.mxu0 0
  %250 = vmatpush1.bf16.msra.mxu0 0
  %251 = vmatprep.subr.bf16.mxu0 0
  %252 = vmatpush1.bf16.msra.mxu0 %v144
  %253 = vmatprep.subr.bf16.mxu0 0
  %254 = vmatpush1.bf16.msra.mxu0 %v141
  %255 = vmatprep.subr.bf16.mxu0 0
  %256 = vmatpush1.bf16.msra.mxu0 %v138
  %257 = vmatprep.subr.bf16.mxu0 0
  %258 = vmatpush1.bf16.msra.mxu0 %v135
  %259 = vmatprep.subr.bf16.mxu0 0
  %260 = vmatpush2.bf16.msra.mxu0 0
  %261 = vmatprep.subr.bf16.mxu0 0
  %262 = vmatpush2.bf16.msra.mxu0 0
  %263 = vmatprep.subr.bf16.mxu0 0
  %264 = vmatpush2.bf16.msra.mxu0 0
  %265 = vmatprep.subr.bf16.mxu0 0
  %266 = vmatpush2.bf16.msra.mxu0 0
  %267 = vmatprep.subr.bf16.mxu0 0
  %268 = vmatpush2.bf16.msra.mxu0 0
  %269 = vmatprep.subr.bf16.mxu0 0
  %270 = vmatpush2.bf16.msra.mxu0 0
  %271 = vmatprep.subr.bf16.mxu0 0
  %272 = vmatpush2.bf16.msra.mxu0 0
  %273 = vmatprep.subr.bf16.mxu0 0
  %274 = vmatpush2.bf16.msra.mxu0 0
  %275 = vmatprep.mubr.bf16.mxu0 0
  %276 = vmatmul.mubr.bf16.gmra.mxu0 %v159
  %v277 = vpop.f32.mrf.mxu0
  %v278 = vadd.f32 %v69, %v277
  %v279 = vpop.f32.mrf.mxu0
  %v280 = vpop.f32.mrf.mxu0
  %v281 = vadd.f32 %v69, %v280
  %v282 = vpop.f32.mrf.mxu0
  %283 = vmatprep.mubr.bf16.mxu0 0
  %284 = vmatmul.mubr.bf16.gmra.mxu0 %v162
  %v285 = vpop.f32.mrf.mxu0
  %v286 = vadd.f32 %v69, %v285
  %v287 = vpop.f32.mrf.mxu0
  %v288 = vpop.f32.mrf.mxu0
  %v289 = vadd.f32 %v69, %v288
  %v290 = vpop.f32.mrf.mxu0
  %291 = vmatprep.mubr.bf16.mxu0 0
  %292 = vmatmul.mubr.bf16.gmra.mxu0 %v165
  %v293 = vpop.f32.mrf.mxu0
  %v294 = vadd.f32 %v69, %v293
  %v295 = vpop.f32.mrf.mxu0
  %v296 = vpop.f32.mrf.mxu0
  %v297 = vadd.f32 %v69, %v296
  %v298 = vpop.f32.mrf.mxu0
  %299 = vmatprep.mubr.bf16.mxu0 0
  %300 = vmatmul.mubr.bf16.gmra.mxu0 %v168
  %v301 = vpop.f32.mrf.mxu0
  %v302 = vadd.f32 %v69, %v301
  %v303 = vpop.f32.mrf.mxu0
  %v304 = vpop.f32.mrf.mxu0
  %v305 = vadd.f32 %v69, %v304
  %v306 = vpop.f32.mrf.mxu0
  %307 = vdwg.mxu0
  %v308 = vadd.f32 %v205, 0.0
  %v309 = vadd.f32 %v207, 0.0
  %v310 = vxor.u32 %v308, 2147483648
  %v311 = vxor.u32 %v309, 2147483648
  %v312 = vmul.f32 %v310, 1.442695
  %v313 = vpow.pop %v312
  %v314 = vmul.f32 %v311, 1.442695
  %v315 = vpow.pop %v314
  %v316 = vadd.f32 %v313, 1.0
  %v317 = vadd.f32 %v315, 1.0
  %v318 = vrcp.pop %v316
  %v319 = vmul.f32 1.0, %v318
  %v320 = vrcp.pop %v317
  %v321 = vmul.f32 1.0, %v320
  %v322 = vadd.f32 %v47, 0.0
  %v323 = vmul.f32 %v319, %v322
  %v324 = vadd.f32 %v278, %v323
  %v325 = vtanh.pop %v324
  %v326 = vsub.f32 1.0, %v321
  %v327 = vmul.f32 %v326, %v325
  %v328 = vmul.f32 %v321, 0.0
  %v329 = vadd.f32 %v327, %v328
  %v330 = vpack.c.bf16 %v329, %v329
  %v339 = vunpack.c.l.b16 %v34
  %v340 = vunpack.c.h.b16 %v34
  %v341 = vunpack.c.l.b16 %v35
  %v342 = vunpack.c.l.b16 %v36
  %v343 = vunpack.c.h.b16 %v36
  %v344 = vunpack.c.l.b16 %v37
  %v345 = vunpack.c.l.b16 %v38
  %v346 = vunpack.c.h.b16 %v38
  %v347 = vunpack.c.l.b16 %v39
  %v348 = vunpack.c.l.b16 %v40
  %v349 = vunpack.c.h.b16 %v40
  %v350 = vunpack.c.l.b16 %v41
  %v351 = vpack.c.b16 %v342, %v339
  %v352 = vpack.c.b16 %v343, %v340
  %v353 = vpack.c.b16 %v344, %v341
  %v354 = vpack.c.b16 %v348, %v345
  %v355 = vpack.c.b16 %v349, %v346
  %v356 = vpack.c.b16 %v350, %v347
  %vm363 = vcmask 261120
  %v365 = vsel %vm363, %v330, 0
  %367 = vmatprep.subr.bf16.mxu0 0
  %368 = vmatpush1.bf16.msra.mxu0 0
  %369 = vmatprep.subr.bf16.mxu0 0
  %370 = vmatpush1.bf16.msra.mxu0 0
  %371 = vmatprep.subr.bf16.mxu0 0
  %372 = vmatpush1.bf16.msra.mxu0 0
  %373 = vmatprep.subr.bf16.mxu0 0
  %374 = vmatpush1.bf16.msra.mxu0 0
  %375 = vmatprep.subr.bf16.mxu0 0
  %376 = vmatpush1.bf16.msra.mxu0 0
  %377 = vmatprep.subr.bf16.mxu0 0
  %378 = vmatpush1.bf16.msra.mxu0 0
  %379 = vmatprep.subr.bf16.mxu0 %v355
  %380 = vmatpush1.bf16.msra.mxu0 %v354
  %381 = vmatprep.subr.bf16.mxu0 %v352
  %382 = vmatpush1.bf16.msra.mxu0 %v351
  %383 = vmatprep.subr.bf16.mxu0 0
  %384 = vmatpush2.bf16.msra.mxu0 0
  %385 = vmatprep.subr.bf16.mxu0 0
  %386 = vmatpush2.bf16.msra.mxu0 0
  %387 = vmatprep.subr.bf16.mxu0 0
  %388 = vmatpush2.bf16.msra.mxu0 0
  %389 = vmatprep.subr.bf16.mxu0 0
  %390 = vmatpush2.bf16.msra.mxu0 0
  %391 = vmatprep.subr.bf16.mxu0 0
  %392 = vmatpush2.bf16.msra.mxu0 0
  %393 = vmatprep.subr.bf16.mxu0 0
  %394 = vmatpush2.bf16.msra.mxu0 0
  %395 = vmatprep.subr.bf16.mxu0 0
  %396 = vmatpush2.bf16.msra.mxu0 0
  %397 = vmatprep.subr.bf16.mxu0 0
  %398 = vmatpush2.bf16.msra.mxu0 0
  %399 = vmatprep.mubr.bf16.mxu0 0
  %400 = vmatmul.mubr.bf16.gmra.mxu0 %v365
  %v401 = vpop.f32.mrf.mxu0
  %v402 = vadd.f32 0.0, %v401
  %v403 = vpop.f32.mrf.mxu0
  %v404 = vadd.f32 0.0, %v403
  %v405 = vpop.f32.mrf.mxu0
  %v406 = vpop.f32.mrf.mxu0
  %407 = vdwg.mxu0
  %408 = vmatprep.subr.bf16.mxu0 0
  %409 = vmatpush1.bf16.msra.mxu0 0
  %410 = vmatprep.subr.bf16.mxu0 0
  %411 = vmatpush1.bf16.msra.mxu0 0
  %412 = vmatprep.subr.bf16.mxu0 0
  %413 = vmatpush1.bf16.msra.mxu0 0
  %414 = vmatprep.subr.bf16.mxu0 0
  %415 = vmatpush1.bf16.msra.mxu0 0
  %416 = vmatprep.subr.bf16.mxu0 0
  %417 = vmatpush1.bf16.msra.mxu0 0
  %418 = vmatprep.subr.bf16.mxu0 0
  %419 = vmatpush1.bf16.msra.mxu0 0
  %420 = vmatprep.subr.bf16.mxu0 0
  %421 = vmatpush1.bf16.msra.mxu0 %v356
  %422 = vmatprep.subr.bf16.mxu0 0
  %423 = vmatpush1.bf16.msra.mxu0 %v353
  %424 = vmatprep.subr.bf16.mxu0 0
  %425 = vmatpush2.bf16.msra.mxu0 0
  %426 = vmatprep.subr.bf16.mxu0 0
  %427 = vmatpush2.bf16.msra.mxu0 0
  %428 = vmatprep.subr.bf16.mxu0 0
  %429 = vmatpush2.bf16.msra.mxu0 0
  %430 = vmatprep.subr.bf16.mxu0 0
  %431 = vmatpush2.bf16.msra.mxu0 0
  %432 = vmatprep.subr.bf16.mxu0 0
  %433 = vmatpush2.bf16.msra.mxu0 0
  %434 = vmatprep.subr.bf16.mxu0 0
  %435 = vmatpush2.bf16.msra.mxu0 0
  %436 = vmatprep.subr.bf16.mxu0 0
  %437 = vmatpush2.bf16.msra.mxu0 0
  %438 = vmatprep.subr.bf16.mxu0 0
  %439 = vmatpush2.bf16.msra.mxu0 0
  %440 = vmatprep.mubr.bf16.mxu0 0
  %441 = vmatmul.mubr.bf16.gmra.mxu0 %v365
  %v442 = vpop.f32.mrf.mxu0
  %v443 = vadd.f32 0.0, %v442
  %v444 = vpop.f32.mrf.mxu0
  %v445 = vpop.f32.mrf.mxu0
  %v446 = vpop.f32.mrf.mxu0
  %447 = vdwg.mxu0
  %v448 = vadd.f32 %v209, %v402
  %v449 = vadd.f32 %v211, %v404
  %v450 = vxor.u32 %v448, 2147483648
  %v451 = vxor.u32 %v449, 2147483648
  %v452 = vmul.f32 %v450, 1.442695
  %v453 = vpow.pop %v452
  %v454 = vmul.f32 %v451, 1.442695
  %v455 = vpow.pop %v454
  %v456 = vadd.f32 %v453, 1.0
  %v457 = vadd.f32 %v455, 1.0
  %v458 = vrcp.pop %v456
  %v459 = vmul.f32 1.0, %v458
  %v460 = vrcp.pop %v457
  %v461 = vmul.f32 1.0, %v460
  %v462 = vadd.f32 %v443, %v47
  %v463 = vmul.f32 %v459, %v462
  %v464 = vadd.f32 %v281, %v463
  %v465 = vtanh.pop %v464
  %v466 = vsub.f32 1.0, %v461
  %v467 = vmul.f32 %v466, %v465
  %v468 = vmul.f32 %v461, %v329
  %v469 = vadd.f32 %v467, %v468
  %v470 = vpack.c.bf16 %v469, %v469
  %v472 = vsel %vm363, %v470, 0
  %474 = vmatprep.subr.bf16.mxu0 0
  %475 = vmatpush1.bf16.msra.mxu0 0
  %476 = vmatprep.subr.bf16.mxu0 0
  %477 = vmatpush1.bf16.msra.mxu0 0
  %478 = vmatprep.subr.bf16.mxu0 0
  %479 = vmatpush1.bf16.msra.mxu0 0
  %480 = vmatprep.subr.bf16.mxu0 0
  %481 = vmatpush1.bf16.msra.mxu0 0
  %482 = vmatprep.subr.bf16.mxu0 0
  %483 = vmatpush1.bf16.msra.mxu0 0
  %484 = vmatprep.subr.bf16.mxu0 0
  %485 = vmatpush1.bf16.msra.mxu0 0
  %486 = vmatprep.subr.bf16.mxu0 %v355
  %487 = vmatpush1.bf16.msra.mxu0 %v354
  %488 = vmatprep.subr.bf16.mxu0 %v352
  %489 = vmatpush1.bf16.msra.mxu0 %v351
  %490 = vmatprep.subr.bf16.mxu0 0
  %491 = vmatpush2.bf16.msra.mxu0 0
  %492 = vmatprep.subr.bf16.mxu0 0
  %493 = vmatpush2.bf16.msra.mxu0 0
  %494 = vmatprep.subr.bf16.mxu0 0
  %495 = vmatpush2.bf16.msra.mxu0 0
  %496 = vmatprep.subr.bf16.mxu0 0
  %497 = vmatpush2.bf16.msra.mxu0 0
  %498 = vmatprep.subr.bf16.mxu0 0
  %499 = vmatpush2.bf16.msra.mxu0 0
  %500 = vmatprep.subr.bf16.mxu0 0
  %501 = vmatpush2.bf16.msra.mxu0 0
  %502 = vmatprep.subr.bf16.mxu0 0
  %503 = vmatpush2.bf16.msra.mxu0 0
  %504 = vmatprep.subr.bf16.mxu0 0
  %505 = vmatpush2.bf16.msra.mxu0 0
  %506 = vmatprep.mubr.bf16.mxu0 0
  %507 = vmatmul.mubr.bf16.gmra.mxu0 %v472
  %v508 = vpop.f32.mrf.mxu0
  %v509 = vadd.f32 0.0, %v508
  %v510 = vpop.f32.mrf.mxu0
  %v511 = vadd.f32 0.0, %v510
  %v512 = vpop.f32.mrf.mxu0
  %v513 = vpop.f32.mrf.mxu0
  %514 = vdwg.mxu0
  %515 = vmatprep.subr.bf16.mxu0 0
  %516 = vmatpush1.bf16.msra.mxu0 0
  %517 = vmatprep.subr.bf16.mxu0 0
  %518 = vmatpush1.bf16.msra.mxu0 0
  %519 = vmatprep.subr.bf16.mxu0 0
  %520 = vmatpush1.bf16.msra.mxu0 0
  %521 = vmatprep.subr.bf16.mxu0 0
  %522 = vmatpush1.bf16.msra.mxu0 0
  %523 = vmatprep.subr.bf16.mxu0 0
  %524 = vmatpush1.bf16.msra.mxu0 0
  %525 = vmatprep.subr.bf16.mxu0 0
  %526 = vmatpush1.bf16.msra.mxu0 0
  %527 = vmatprep.subr.bf16.mxu0 0
  %528 = vmatpush1.bf16.msra.mxu0 %v356
  %529 = vmatprep.subr.bf16.mxu0 0
  %530 = vmatpush1.bf16.msra.mxu0 %v353
  %531 = vmatprep.subr.bf16.mxu0 0
  %532 = vmatpush2.bf16.msra.mxu0 0
  %533 = vmatprep.subr.bf16.mxu0 0
  %534 = vmatpush2.bf16.msra.mxu0 0
  %535 = vmatprep.subr.bf16.mxu0 0
  %536 = vmatpush2.bf16.msra.mxu0 0
  %537 = vmatprep.subr.bf16.mxu0 0
  %538 = vmatpush2.bf16.msra.mxu0 0
  %539 = vmatprep.subr.bf16.mxu0 0
  %540 = vmatpush2.bf16.msra.mxu0 0
  %541 = vmatprep.subr.bf16.mxu0 0
  %542 = vmatpush2.bf16.msra.mxu0 0
  %543 = vmatprep.subr.bf16.mxu0 0
  %544 = vmatpush2.bf16.msra.mxu0 0
  %545 = vmatprep.subr.bf16.mxu0 0
  %546 = vmatpush2.bf16.msra.mxu0 0
  %547 = vmatprep.mubr.bf16.mxu0 0
  %548 = vmatmul.mubr.bf16.gmra.mxu0 %v472
  %v549 = vpop.f32.mrf.mxu0
  %v550 = vadd.f32 0.0, %v549
  %v551 = vpop.f32.mrf.mxu0
  %v552 = vpop.f32.mrf.mxu0
  %v553 = vpop.f32.mrf.mxu0
  %554 = vdwg.mxu0
  %v555 = vadd.f32 %v215, %v509
  %v556 = vadd.f32 %v217, %v511
  %v557 = vxor.u32 %v555, 2147483648
  %v558 = vxor.u32 %v556, 2147483648
  %v559 = vmul.f32 %v557, 1.442695
  %v560 = vpow.pop %v559
  %v561 = vmul.f32 %v558, 1.442695
  %v562 = vpow.pop %v561
  %v563 = vadd.f32 %v560, 1.0
  %v564 = vadd.f32 %v562, 1.0
  %v565 = vrcp.pop %v563
  %v566 = vmul.f32 1.0, %v565
  %v567 = vrcp.pop %v564
  %v568 = vmul.f32 1.0, %v567
  %v569 = vadd.f32 %v550, %v47
  %v570 = vmul.f32 %v566, %v569
  %v571 = vadd.f32 %v286, %v570
  %v572 = vtanh.pop %v571
  %v573 = vsub.f32 1.0, %v568
  %v574 = vmul.f32 %v573, %v572
  %v575 = vmul.f32 %v568, %v469
  %v576 = vadd.f32 %v574, %v575
  %v577 = vpack.c.bf16 %v576, %v576
  %v579 = vsel %vm363, %v577, 0
  %581 = vmatprep.subr.bf16.mxu0 0
  %582 = vmatpush1.bf16.msra.mxu0 0
  %583 = vmatprep.subr.bf16.mxu0 0
  %584 = vmatpush1.bf16.msra.mxu0 0
  %585 = vmatprep.subr.bf16.mxu0 0
  %586 = vmatpush1.bf16.msra.mxu0 0
  %587 = vmatprep.subr.bf16.mxu0 0
  %588 = vmatpush1.bf16.msra.mxu0 0
  %589 = vmatprep.subr.bf16.mxu0 0
  %590 = vmatpush1.bf16.msra.mxu0 0
  %591 = vmatprep.subr.bf16.mxu0 0
  %592 = vmatpush1.bf16.msra.mxu0 0
  %593 = vmatprep.subr.bf16.mxu0 %v355
  %594 = vmatpush1.bf16.msra.mxu0 %v354
  %595 = vmatprep.subr.bf16.mxu0 %v352
  %596 = vmatpush1.bf16.msra.mxu0 %v351
  %597 = vmatprep.subr.bf16.mxu0 0
  %598 = vmatpush2.bf16.msra.mxu0 0
  %599 = vmatprep.subr.bf16.mxu0 0
  %600 = vmatpush2.bf16.msra.mxu0 0
  %601 = vmatprep.subr.bf16.mxu0 0
  %602 = vmatpush2.bf16.msra.mxu0 0
  %603 = vmatprep.subr.bf16.mxu0 0
  %604 = vmatpush2.bf16.msra.mxu0 0
  %605 = vmatprep.subr.bf16.mxu0 0
  %606 = vmatpush2.bf16.msra.mxu0 0
  %607 = vmatprep.subr.bf16.mxu0 0
  %608 = vmatpush2.bf16.msra.mxu0 0
  %609 = vmatprep.subr.bf16.mxu0 0
  %610 = vmatpush2.bf16.msra.mxu0 0
  %611 = vmatprep.subr.bf16.mxu0 0
  %612 = vmatpush2.bf16.msra.mxu0 0
  %613 = vmatprep.mubr.bf16.mxu0 0
  %614 = vmatmul.mubr.bf16.gmra.mxu0 %v579
  %v615 = vpop.f32.mrf.mxu0
  %v616 = vadd.f32 0.0, %v615
  %v617 = vpop.f32.mrf.mxu0
  %v618 = vadd.f32 0.0, %v617
  %v619 = vpop.f32.mrf.mxu0
  %v620 = vpop.f32.mrf.mxu0
  %621 = vdwg.mxu0
  %622 = vmatprep.subr.bf16.mxu0 0
  %623 = vmatpush1.bf16.msra.mxu0 0
  %624 = vmatprep.subr.bf16.mxu0 0
  %625 = vmatpush1.bf16.msra.mxu0 0
  %626 = vmatprep.subr.bf16.mxu0 0
  %627 = vmatpush1.bf16.msra.mxu0 0
  %628 = vmatprep.subr.bf16.mxu0 0
  %629 = vmatpush1.bf16.msra.mxu0 0
  %630 = vmatprep.subr.bf16.mxu0 0
  %631 = vmatpush1.bf16.msra.mxu0 0
  %632 = vmatprep.subr.bf16.mxu0 0
  %633 = vmatpush1.bf16.msra.mxu0 0
  %634 = vmatprep.subr.bf16.mxu0 0
  %635 = vmatpush1.bf16.msra.mxu0 %v356
  %636 = vmatprep.subr.bf16.mxu0 0
  %637 = vmatpush1.bf16.msra.mxu0 %v353
  %638 = vmatprep.subr.bf16.mxu0 0
  %639 = vmatpush2.bf16.msra.mxu0 0
  %640 = vmatprep.subr.bf16.mxu0 0
  %641 = vmatpush2.bf16.msra.mxu0 0
  %642 = vmatprep.subr.bf16.mxu0 0
  %643 = vmatpush2.bf16.msra.mxu0 0
  %644 = vmatprep.subr.bf16.mxu0 0
  %645 = vmatpush2.bf16.msra.mxu0 0
  %646 = vmatprep.subr.bf16.mxu0 0
  %647 = vmatpush2.bf16.msra.mxu0 0
  %648 = vmatprep.subr.bf16.mxu0 0
  %649 = vmatpush2.bf16.msra.mxu0 0
  %650 = vmatprep.subr.bf16.mxu0 0
  %651 = vmatpush2.bf16.msra.mxu0 0
  %652 = vmatprep.subr.bf16.mxu0 0
  %653 = vmatpush2.bf16.msra.mxu0 0
  %654 = vmatprep.mubr.bf16.mxu0 0
  %655 = vmatmul.mubr.bf16.gmra.mxu0 %v579
  %v656 = vpop.f32.mrf.mxu0
  %v657 = vadd.f32 0.0, %v656
  %v658 = vpop.f32.mrf.mxu0
  %v659 = vpop.f32.mrf.mxu0
  %v660 = vpop.f32.mrf.mxu0
  %661 = vdwg.mxu0
  %v662 = vadd.f32 %v219, %v616
  %v663 = vadd.f32 %v221, %v618
  %v664 = vxor.u32 %v662, 2147483648
  %v665 = vxor.u32 %v663, 2147483648
  %v666 = vmul.f32 %v664, 1.442695
  %v667 = vpow.pop %v666
  %v668 = vmul.f32 %v665, 1.442695
  %v669 = vpow.pop %v668
  %v670 = vadd.f32 %v667, 1.0
  %v671 = vadd.f32 %v669, 1.0
  %v672 = vrcp.pop %v670
  %v673 = vmul.f32 1.0, %v672
  %v674 = vrcp.pop %v671
  %v675 = vmul.f32 1.0, %v674
  %v676 = vadd.f32 %v657, %v47
  %v677 = vmul.f32 %v673, %v676
  %v678 = vadd.f32 %v289, %v677
  %v679 = vtanh.pop %v678
  %v680 = vsub.f32 1.0, %v675
  %v681 = vmul.f32 %v680, %v679
  %v682 = vmul.f32 %v675, %v576
  %v683 = vadd.f32 %v681, %v682
  %v684 = vpack.c.bf16 %v683, %v683
  %v686 = vsel %vm363, %v684, 0
  %688 = vmatprep.subr.bf16.mxu0 0
  %689 = vmatpush1.bf16.msra.mxu0 0
  %690 = vmatprep.subr.bf16.mxu0 0
  %691 = vmatpush1.bf16.msra.mxu0 0
  %692 = vmatprep.subr.bf16.mxu0 0
  %693 = vmatpush1.bf16.msra.mxu0 0
  %694 = vmatprep.subr.bf16.mxu0 0
  %695 = vmatpush1.bf16.msra.mxu0 0
  %696 = vmatprep.subr.bf16.mxu0 0
  %697 = vmatpush1.bf16.msra.mxu0 0
  %698 = vmatprep.subr.bf16.mxu0 0
  %699 = vmatpush1.bf16.msra.mxu0 0
  %700 = vmatprep.subr.bf16.mxu0 %v355
  %701 = vmatpush1.bf16.msra.mxu0 %v354
  %702 = vmatprep.subr.bf16.mxu0 %v352
  %703 = vmatpush1.bf16.msra.mxu0 %v351
  %704 = vmatprep.subr.bf16.mxu0 0
  %705 = vmatpush2.bf16.msra.mxu0 0
  %706 = vmatprep.subr.bf16.mxu0 0
  %707 = vmatpush2.bf16.msra.mxu0 0
  %708 = vmatprep.subr.bf16.mxu0 0
  %709 = vmatpush2.bf16.msra.mxu0 0
  %710 = vmatprep.subr.bf16.mxu0 0
  %711 = vmatpush2.bf16.msra.mxu0 0
  %712 = vmatprep.subr.bf16.mxu0 0
  %713 = vmatpush2.bf16.msra.mxu0 0
  %714 = vmatprep.subr.bf16.mxu0 0
  %715 = vmatpush2.bf16.msra.mxu0 0
  %716 = vmatprep.subr.bf16.mxu0 0
  %717 = vmatpush2.bf16.msra.mxu0 0
  %718 = vmatprep.subr.bf16.mxu0 0
  %719 = vmatpush2.bf16.msra.mxu0 0
  %720 = vmatprep.mubr.bf16.mxu0 0
  %721 = vmatmul.mubr.bf16.gmra.mxu0 %v686
  %v722 = vpop.f32.mrf.mxu0
  %v723 = vadd.f32 0.0, %v722
  %v724 = vpop.f32.mrf.mxu0
  %v725 = vadd.f32 0.0, %v724
  %v726 = vpop.f32.mrf.mxu0
  %v727 = vpop.f32.mrf.mxu0
  %728 = vdwg.mxu0
  %729 = vmatprep.subr.bf16.mxu0 0
  %730 = vmatpush1.bf16.msra.mxu0 0
  %731 = vmatprep.subr.bf16.mxu0 0
  %732 = vmatpush1.bf16.msra.mxu0 0
  %733 = vmatprep.subr.bf16.mxu0 0
  %734 = vmatpush1.bf16.msra.mxu0 0
  %735 = vmatprep.subr.bf16.mxu0 0
  %736 = vmatpush1.bf16.msra.mxu0 0
  %737 = vmatprep.subr.bf16.mxu0 0
  %738 = vmatpush1.bf16.msra.mxu0 0
  %739 = vmatprep.subr.bf16.mxu0 0
  %740 = vmatpush1.bf16.msra.mxu0 0
  %741 = vmatprep.subr.bf16.mxu0 0
  %742 = vmatpush1.bf16.msra.mxu0 %v356
  %743 = vmatprep.subr.bf16.mxu0 0
  %744 = vmatpush1.bf16.msra.mxu0 %v353
  %745 = vmatprep.subr.bf16.mxu0 0
  %746 = vmatpush2.bf16.msra.mxu0 0
  %747 = vmatprep.subr.bf16.mxu0 0
  %748 = vmatpush2.bf16.msra.mxu0 0
  %749 = vmatprep.subr.bf16.mxu0 0
  %750 = vmatpush2.bf16.msra.mxu0 0
  %751 = vmatprep.subr.bf16.mxu0 0
  %752 = vmatpush2.bf16.msra.mxu0 0
  %753 = vmatprep.subr.bf16.mxu0 0
  %754 = vmatpush2.bf16.msra.mxu0 0
  %755 = vmatprep.subr.bf16.mxu0 0
  %756 = vmatpush2.bf16.msra.mxu0 0
  %757 = vmatprep.subr.bf16.mxu0 0
  %758 = vmatpush2.bf16.msra.mxu0 0
  %759 = vmatprep.subr.bf16.mxu0 0
  %760 = vmatpush2.bf16.msra.mxu0 0
  %761 = vmatprep.mubr.bf16.mxu0 0
  %762 = vmatmul.mubr.bf16.gmra.mxu0 %v686
  %v763 = vpop.f32.mrf.mxu0
  %v764 = vadd.f32 0.0, %v763
  %v765 = vpop.f32.mrf.mxu0
  %v766 = vpop.f32.mrf.mxu0
  %v767 = vpop.f32.mrf.mxu0
  %768 = vdwg.mxu0
  %v769 = vadd.f32 %v225, %v723
  %v770 = vadd.f32 %v227, %v725
  %v771 = vxor.u32 %v769, 2147483648
  %v772 = vxor.u32 %v770, 2147483648
  %v773 = vmul.f32 %v771, 1.442695
  %v774 = vpow.pop %v773
  %v775 = vmul.f32 %v772, 1.442695
  %v776 = vpow.pop %v775
  %v777 = vadd.f32 %v774, 1.0
  %v778 = vadd.f32 %v776, 1.0
  %v779 = vrcp.pop %v777
  %v780 = vmul.f32 1.0, %v779
  %v781 = vrcp.pop %v778
  %v782 = vmul.f32 1.0, %v781
  %v783 = vadd.f32 %v764, %v47
  %v784 = vmul.f32 %v780, %v783
  %v785 = vadd.f32 %v294, %v784
  %v786 = vtanh.pop %v785
  %v787 = vsub.f32 1.0, %v782
  %v788 = vmul.f32 %v787, %v786
  %v789 = vmul.f32 %v782, %v683
  %v790 = vadd.f32 %v788, %v789
  %v791 = vpack.c.bf16 %v790, %v790
  %v793 = vsel %vm363, %v791, 0
  %795 = vmatprep.subr.bf16.mxu0 0
  %796 = vmatpush1.bf16.msra.mxu0 0
  %797 = vmatprep.subr.bf16.mxu0 0
  %798 = vmatpush1.bf16.msra.mxu0 0
  %799 = vmatprep.subr.bf16.mxu0 0
  %800 = vmatpush1.bf16.msra.mxu0 0
  %801 = vmatprep.subr.bf16.mxu0 0
  %802 = vmatpush1.bf16.msra.mxu0 0
  %803 = vmatprep.subr.bf16.mxu0 0
  %804 = vmatpush1.bf16.msra.mxu0 0
  %805 = vmatprep.subr.bf16.mxu0 0
  %806 = vmatpush1.bf16.msra.mxu0 0
  %807 = vmatprep.subr.bf16.mxu0 %v355
  %808 = vmatpush1.bf16.msra.mxu0 %v354
  %809 = vmatprep.subr.bf16.mxu0 %v352
  %810 = vmatpush1.bf16.msra.mxu0 %v351
  %811 = vmatprep.subr.bf16.mxu0 0
  %812 = vmatpush2.bf16.msra.mxu0 0
  %813 = vmatprep.subr.bf16.mxu0 0
  %814 = vmatpush2.bf16.msra.mxu0 0
  %815 = vmatprep.subr.bf16.mxu0 0
  %816 = vmatpush2.bf16.msra.mxu0 0
  %817 = vmatprep.subr.bf16.mxu0 0
  %818 = vmatpush2.bf16.msra.mxu0 0
  %819 = vmatprep.subr.bf16.mxu0 0
  %820 = vmatpush2.bf16.msra.mxu0 0
  %821 = vmatprep.subr.bf16.mxu0 0
  %822 = vmatpush2.bf16.msra.mxu0 0
  %823 = vmatprep.subr.bf16.mxu0 0
  %824 = vmatpush2.bf16.msra.mxu0 0
  %825 = vmatprep.subr.bf16.mxu0 0
  %826 = vmatpush2.bf16.msra.mxu0 0
  %827 = vmatprep.mubr.bf16.mxu0 0
  %828 = vmatmul.mubr.bf16.gmra.mxu0 %v793
  %v829 = vpop.f32.mrf.mxu0
  %v830 = vadd.f32 0.0, %v829
  %v831 = vpop.f32.mrf.mxu0
  %v832 = vadd.f32 0.0, %v831
  %v833 = vpop.f32.mrf.mxu0
  %v834 = vpop.f32.mrf.mxu0
  %835 = vdwg.mxu0
  %836 = vmatprep.subr.bf16.mxu0 0
  %837 = vmatpush1.bf16.msra.mxu0 0
  %838 = vmatprep.subr.bf16.mxu0 0
  %839 = vmatpush1.bf16.msra.mxu0 0
  %840 = vmatprep.subr.bf16.mxu0 0
  %841 = vmatpush1.bf16.msra.mxu0 0
  %842 = vmatprep.subr.bf16.mxu0 0
  %843 = vmatpush1.bf16.msra.mxu0 0
  %844 = vmatprep.subr.bf16.mxu0 0
  %845 = vmatpush1.bf16.msra.mxu0 0
  %846 = vmatprep.subr.bf16.mxu0 0
  %847 = vmatpush1.bf16.msra.mxu0 0
  %848 = vmatprep.subr.bf16.mxu0 0
  %849 = vmatpush1.bf16.msra.mxu0 %v356
  %850 = vmatprep.subr.bf16.mxu0 0
  %851 = vmatpush1.bf16.msra.mxu0 %v353
  %852 = vmatprep.subr.bf16.mxu0 0
  %853 = vmatpush2.bf16.msra.mxu0 0
  %854 = vmatprep.subr.bf16.mxu0 0
  %855 = vmatpush2.bf16.msra.mxu0 0
  %856 = vmatprep.subr.bf16.mxu0 0
  %857 = vmatpush2.bf16.msra.mxu0 0
  %858 = vmatprep.subr.bf16.mxu0 0
  %859 = vmatpush2.bf16.msra.mxu0 0
  %860 = vmatprep.subr.bf16.mxu0 0
  %861 = vmatpush2.bf16.msra.mxu0 0
  %862 = vmatprep.subr.bf16.mxu0 0
  %863 = vmatpush2.bf16.msra.mxu0 0
  %864 = vmatprep.subr.bf16.mxu0 0
  %865 = vmatpush2.bf16.msra.mxu0 0
  %866 = vmatprep.subr.bf16.mxu0 0
  %867 = vmatpush2.bf16.msra.mxu0 0
  %868 = vmatprep.mubr.bf16.mxu0 0
  %869 = vmatmul.mubr.bf16.gmra.mxu0 %v793
  %v870 = vpop.f32.mrf.mxu0
  %v871 = vadd.f32 0.0, %v870
  %v872 = vpop.f32.mrf.mxu0
  %v873 = vpop.f32.mrf.mxu0
  %v874 = vpop.f32.mrf.mxu0
  %875 = vdwg.mxu0
  %v876 = vadd.f32 %v229, %v830
  %v877 = vadd.f32 %v231, %v832
  %v878 = vxor.u32 %v876, 2147483648
  %v879 = vxor.u32 %v877, 2147483648
  %v880 = vmul.f32 %v878, 1.442695
  %v881 = vpow.pop %v880
  %v882 = vmul.f32 %v879, 1.442695
  %v883 = vpow.pop %v882
  %v884 = vadd.f32 %v881, 1.0
  %v885 = vadd.f32 %v883, 1.0
  %v886 = vrcp.pop %v884
  %v887 = vmul.f32 1.0, %v886
  %v888 = vrcp.pop %v885
  %v889 = vmul.f32 1.0, %v888
  %v890 = vadd.f32 %v871, %v47
  %v891 = vmul.f32 %v887, %v890
  %v892 = vadd.f32 %v297, %v891
  %v893 = vtanh.pop %v892
  %v894 = vsub.f32 1.0, %v889
  %v895 = vmul.f32 %v894, %v893
  %v896 = vmul.f32 %v889, %v790
  %v897 = vadd.f32 %v895, %v896
  %v898 = vpack.c.bf16 %v897, %v897
  %v900 = vsel %vm363, %v898, 0
  %902 = vmatprep.subr.bf16.mxu0 0
  %903 = vmatpush1.bf16.msra.mxu0 0
  %904 = vmatprep.subr.bf16.mxu0 0
  %905 = vmatpush1.bf16.msra.mxu0 0
  %906 = vmatprep.subr.bf16.mxu0 0
  %907 = vmatpush1.bf16.msra.mxu0 0
  %908 = vmatprep.subr.bf16.mxu0 0
  %909 = vmatpush1.bf16.msra.mxu0 0
  %910 = vmatprep.subr.bf16.mxu0 0
  %911 = vmatpush1.bf16.msra.mxu0 0
  %912 = vmatprep.subr.bf16.mxu0 0
  %913 = vmatpush1.bf16.msra.mxu0 0
  %914 = vmatprep.subr.bf16.mxu0 %v355
  %915 = vmatpush1.bf16.msra.mxu0 %v354
  %916 = vmatprep.subr.bf16.mxu0 %v352
  %917 = vmatpush1.bf16.msra.mxu0 %v351
  %918 = vmatprep.subr.bf16.mxu0 0
  %919 = vmatpush2.bf16.msra.mxu0 0
  %920 = vmatprep.subr.bf16.mxu0 0
  %921 = vmatpush2.bf16.msra.mxu0 0
  %922 = vmatprep.subr.bf16.mxu0 0
  %923 = vmatpush2.bf16.msra.mxu0 0
  %924 = vmatprep.subr.bf16.mxu0 0
  %925 = vmatpush2.bf16.msra.mxu0 0
  %926 = vmatprep.subr.bf16.mxu0 0
  %927 = vmatpush2.bf16.msra.mxu0 0
  %928 = vmatprep.subr.bf16.mxu0 0
  %929 = vmatpush2.bf16.msra.mxu0 0
  %930 = vmatprep.subr.bf16.mxu0 0
  %931 = vmatpush2.bf16.msra.mxu0 0
  %932 = vmatprep.subr.bf16.mxu0 0
  %933 = vmatpush2.bf16.msra.mxu0 0
  %934 = vmatprep.mubr.bf16.mxu0 0
  %935 = vmatmul.mubr.bf16.gmra.mxu0 %v900
  %v936 = vpop.f32.mrf.mxu0
  %v937 = vadd.f32 0.0, %v936
  %v938 = vpop.f32.mrf.mxu0
  %v939 = vadd.f32 0.0, %v938
  %v940 = vpop.f32.mrf.mxu0
  %v941 = vpop.f32.mrf.mxu0
  %942 = vdwg.mxu0
  %943 = vmatprep.subr.bf16.mxu0 0
  %944 = vmatpush1.bf16.msra.mxu0 0
  %945 = vmatprep.subr.bf16.mxu0 0
  %946 = vmatpush1.bf16.msra.mxu0 0
  %947 = vmatprep.subr.bf16.mxu0 0
  %948 = vmatpush1.bf16.msra.mxu0 0
  %949 = vmatprep.subr.bf16.mxu0 0
  %950 = vmatpush1.bf16.msra.mxu0 0
  %951 = vmatprep.subr.bf16.mxu0 0
  %952 = vmatpush1.bf16.msra.mxu0 0
  %953 = vmatprep.subr.bf16.mxu0 0
  %954 = vmatpush1.bf16.msra.mxu0 0
  %955 = vmatprep.subr.bf16.mxu0 0
  %956 = vmatpush1.bf16.msra.mxu0 %v356
  %957 = vmatprep.subr.bf16.mxu0 0
  %958 = vmatpush1.bf16.msra.mxu0 %v353
  %959 = vmatprep.subr.bf16.mxu0 0
  %960 = vmatpush2.bf16.msra.mxu0 0
  %961 = vmatprep.subr.bf16.mxu0 0
  %962 = vmatpush2.bf16.msra.mxu0 0
  %963 = vmatprep.subr.bf16.mxu0 0
  %964 = vmatpush2.bf16.msra.mxu0 0
  %965 = vmatprep.subr.bf16.mxu0 0
  %966 = vmatpush2.bf16.msra.mxu0 0
  %967 = vmatprep.subr.bf16.mxu0 0
  %968 = vmatpush2.bf16.msra.mxu0 0
  %969 = vmatprep.subr.bf16.mxu0 0
  %970 = vmatpush2.bf16.msra.mxu0 0
  %971 = vmatprep.subr.bf16.mxu0 0
  %972 = vmatpush2.bf16.msra.mxu0 0
  %973 = vmatprep.subr.bf16.mxu0 0
  %974 = vmatpush2.bf16.msra.mxu0 0
  %975 = vmatprep.mubr.bf16.mxu0 0
  %976 = vmatmul.mubr.bf16.gmra.mxu0 %v900
  %v977 = vpop.f32.mrf.mxu0
  %v978 = vadd.f32 0.0, %v977
  %v979 = vpop.f32.mrf.mxu0
  %v980 = vpop.f32.mrf.mxu0
  %v981 = vpop.f32.mrf.mxu0
  %982 = vdwg.mxu0
  %v983 = vadd.f32 %v235, %v937
  %v984 = vadd.f32 %v237, %v939
  %v985 = vxor.u32 %v983, 2147483648
  %v986 = vxor.u32 %v984, 2147483648
  %v987 = vmul.f32 %v985, 1.442695
  %v988 = vpow.pop %v987
  %v989 = vmul.f32 %v986, 1.442695
  %v990 = vpow.pop %v989
  %v991 = vadd.f32 %v988, 1.0
  %v992 = vadd.f32 %v990, 1.0
  %v993 = vrcp.pop %v991
  %v994 = vmul.f32 1.0, %v993
  %v995 = vrcp.pop %v992
  %v996 = vmul.f32 1.0, %v995
  %v997 = vadd.f32 %v978, %v47
  %v998 = vmul.f32 %v994, %v997
  %v999 = vadd.f32 %v302, %v998
  %v1000 = vtanh.pop %v999
  %v1001 = vsub.f32 1.0, %v996
  %v1002 = vmul.f32 %v1001, %v1000
  %v1003 = vmul.f32 %v996, %v897
  %v1004 = vadd.f32 %v1002, %v1003
  %v1005 = vpack.c.bf16 %v1004, %v1004
  %v1007 = vsel %vm363, %v1005, 0
  %1009 = vmatprep.subr.bf16.mxu0 0
  %1010 = vmatpush1.bf16.msra.mxu0 0
  %1011 = vmatprep.subr.bf16.mxu0 0
  %1012 = vmatpush1.bf16.msra.mxu0 0
  %1013 = vmatprep.subr.bf16.mxu0 0
  %1014 = vmatpush1.bf16.msra.mxu0 0
  %1015 = vmatprep.subr.bf16.mxu0 0
  %1016 = vmatpush1.bf16.msra.mxu0 0
  %1017 = vmatprep.subr.bf16.mxu0 0
  %1018 = vmatpush1.bf16.msra.mxu0 0
  %1019 = vmatprep.subr.bf16.mxu0 0
  %1020 = vmatpush1.bf16.msra.mxu0 0
  %1021 = vmatprep.subr.bf16.mxu0 %v355
  %1022 = vmatpush1.bf16.msra.mxu0 %v354
  %1023 = vmatprep.subr.bf16.mxu0 %v352
  %1024 = vmatpush1.bf16.msra.mxu0 %v351
  %1025 = vmatprep.subr.bf16.mxu0 0
  %1026 = vmatpush2.bf16.msra.mxu0 0
  %1027 = vmatprep.subr.bf16.mxu0 0
  %1028 = vmatpush2.bf16.msra.mxu0 0
  %1029 = vmatprep.subr.bf16.mxu0 0
  %1030 = vmatpush2.bf16.msra.mxu0 0
  %1031 = vmatprep.subr.bf16.mxu0 0
  %1032 = vmatpush2.bf16.msra.mxu0 0
  %1033 = vmatprep.subr.bf16.mxu0 0
  %1034 = vmatpush2.bf16.msra.mxu0 0
  %1035 = vmatprep.subr.bf16.mxu0 0
  %1036 = vmatpush2.bf16.msra.mxu0 0
  %1037 = vmatprep.subr.bf16.mxu0 0
  %1038 = vmatpush2.bf16.msra.mxu0 0
  %1039 = vmatprep.subr.bf16.mxu0 0
  %1040 = vmatpush2.bf16.msra.mxu0 0
  %1041 = vmatprep.mubr.bf16.mxu0 0
  %1042 = vmatmul.mubr.bf16.gmra.mxu0 %v1007
  %v1043 = vpop.f32.mrf.mxu0
  %v1044 = vadd.f32 0.0, %v1043
  %v1045 = vpop.f32.mrf.mxu0
  %v1046 = vadd.f32 0.0, %v1045
  %v1047 = vpop.f32.mrf.mxu0
  %v1048 = vpop.f32.mrf.mxu0
  %1049 = vdwg.mxu0
  %1050 = vmatprep.subr.bf16.mxu0 0
  %1051 = vmatpush1.bf16.msra.mxu0 0
  %1052 = vmatprep.subr.bf16.mxu0 0
  %1053 = vmatpush1.bf16.msra.mxu0 0
  %1054 = vmatprep.subr.bf16.mxu0 0
  %1055 = vmatpush1.bf16.msra.mxu0 0
  %1056 = vmatprep.subr.bf16.mxu0 0
  %1057 = vmatpush1.bf16.msra.mxu0 0
  %1058 = vmatprep.subr.bf16.mxu0 0
  %1059 = vmatpush1.bf16.msra.mxu0 0
  %1060 = vmatprep.subr.bf16.mxu0 0
  %1061 = vmatpush1.bf16.msra.mxu0 0
  %1062 = vmatprep.subr.bf16.mxu0 0
  %1063 = vmatpush1.bf16.msra.mxu0 %v356
  %1064 = vmatprep.subr.bf16.mxu0 0
  %1065 = vmatpush1.bf16.msra.mxu0 %v353
  %1066 = vmatprep.subr.bf16.mxu0 0
  %1067 = vmatpush2.bf16.msra.mxu0 0
  %1068 = vmatprep.subr.bf16.mxu0 0
  %1069 = vmatpush2.bf16.msra.mxu0 0
  %1070 = vmatprep.subr.bf16.mxu0 0
  %1071 = vmatpush2.bf16.msra.mxu0 0
  %1072 = vmatprep.subr.bf16.mxu0 0
  %1073 = vmatpush2.bf16.msra.mxu0 0
  %1074 = vmatprep.subr.bf16.mxu0 0
  %1075 = vmatpush2.bf16.msra.mxu0 0
  %1076 = vmatprep.subr.bf16.mxu0 0
  %1077 = vmatpush2.bf16.msra.mxu0 0
  %1078 = vmatprep.subr.bf16.mxu0 0
  %1079 = vmatpush2.bf16.msra.mxu0 0
  %1080 = vmatprep.subr.bf16.mxu0 0
  %1081 = vmatpush2.bf16.msra.mxu0 0
  %1082 = vmatprep.mubr.bf16.mxu0 0
  %1083 = vmatmul.mubr.bf16.gmra.mxu0 %v1007
  %v1084 = vpop.f32.mrf.mxu0
  %v1085 = vadd.f32 0.0, %v1084
  %v1086 = vpop.f32.mrf.mxu0
  %v1087 = vpop.f32.mrf.mxu0
  %v1088 = vpop.f32.mrf.mxu0
  %1089 = vdwg.mxu0
  %v1090 = vadd.f32 %v239, %v1044
  %v1091 = vadd.f32 %v241, %v1046
  %v1092 = vxor.u32 %v1090, 2147483648
  %v1093 = vxor.u32 %v1091, 2147483648
  %v1094 = vmul.f32 %v1092, 1.442695
  %v1095 = vpow.pop %v1094
  %v1096 = vmul.f32 %v1093, 1.442695
  %v1097 = vpow.pop %v1096
  %v1098 = vadd.f32 %v1095, 1.0
  %v1099 = vadd.f32 %v1097, 1.0
  %v1100 = vrcp.pop %v1098
  %v1101 = vmul.f32 1.0, %v1100
  %v1102 = vrcp.pop %v1099
  %v1103 = vmul.f32 1.0, %v1102
  %v1104 = vadd.f32 %v1085, %v47
  %v1105 = vmul.f32 %v1101, %v1104
  %v1106 = vadd.f32 %v305, %v1105
  %v1107 = vtanh.pop %v1106
  %v1108 = vsub.f32 1.0, %v1103
  %v1109 = vmul.f32 %v1108, %v1107
  %v1110 = vmul.f32 %v1103, %v1004
  %v1111 = vadd.f32 %v1109, %v1110
  %1113 = vrot.lane.b32.xlu0 %v469, 32
  %v1114 = vpop.permute.xlu0 %1113
  %1117 = vrot.lane.b32.xlu0 %v576, 64
  %v1118 = vpop.permute.xlu0 %1117
  %1121 = vrot.lane.b32.xlu0 %v683, 96
  %v1122 = vpop.permute.xlu0 %1121
  %1125 = vrot.lane.b32.xlu0 %v897, 32
  %v1126 = vpop.permute.xlu0 %1125
  %1129 = vrot.lane.b32.xlu0 %v1004, 64
  %v1130 = vpop.permute.xlu0 %1129
  %1133 = vrot.lane.b32.xlu0 %v1111, 96
  %v1134 = vpop.permute.xlu0 %1133
  %v1136 = vsel %vm363, %v329, %v1114
  %v1137 = vsel %vm157, %v1136, %v1118
  %vm1138 = vcmask 785408
  %v1139 = vsel %vm1138, %v1137, %v1122
  %v1140 = vsel %vm363, %v790, %v1126
  %v1141 = vsel %vm157, %v1140, %v1130
  %v1142 = vsel %vm1138, %v1141, %v1134
  %v1143 = vld [vmem:[%s3] sm:$0xff]
  %v1144 = vld [vmem:[%s3 + $0x8] sm:$0xff]
  %v1145 = vld [vmem:[%s3 + $0x10] sm:$0xff]
  %v1146 = vld [vmem:[%s3 + $0x18] sm:$0xff]
  %v1147 = vld [vmem:[%s3 + $0x20] sm:$0xff]
  %v1148 = vld [vmem:[%s3 + $0x28] sm:$0xff]
  %v1149 = vld [vmem:[%s3 + $0x30] sm:$0xff]
  %v1150 = vld [vmem:[%s3 + $0x38] sm:$0xff]
  %v1151 = vld [vmem:[%s3 + $0x40] sm:$0xff]
  %v1152 = vld [vmem:[%s3 + $0x48] sm:$0xff]
  %v1153 = vld [vmem:[%s3 + $0x50] sm:$0xff]
  %v1154 = vld [vmem:[%s3 + $0x58] sm:$0xff]
  %v1155 = vld [vmem:[%s3 + $0x60] sm:$0xff]
  %v1156 = vld [vmem:[%s3 + $0x68] sm:$0xff]
  %v1157 = vld [vmem:[%s3 + $0x70] sm:$0xff]
  %v1158 = vld [vmem:[%s3 + $0x78] sm:$0xff]
  %v1159 = vld [vmem:[%s3 + $0x80] sm:$0xff]
  %v1160 = vld [vmem:[%s3 + $0x88] sm:$0xff]
  %v1161 = vld [vmem:[%s3 + $0x90] sm:$0xff]
  %v1162 = vld [vmem:[%s3 + $0x98] sm:$0xff]
  %v1163 = vld [vmem:[%s3 + $0xa0] sm:$0xff]
  %v1164 = vld [vmem:[%s3 + $0xa8] sm:$0xff]
  %v1165 = vld [vmem:[%s3 + $0xb0] sm:$0xff]
  %v1166 = vld [vmem:[%s3 + $0xb8] sm:$0xff]
  %v1167 = vld [vmem:[%s3 + $0xc0] sm:$0xff]
  %v1168 = vld [vmem:[%s3 + $0xc8] sm:$0xff]
  %v1169 = vld [vmem:[%s3 + $0xd0] sm:$0xff]
  %v1170 = vld [vmem:[%s3 + $0xd8] sm:$0xff]
  %v1171 = vld [vmem:[%s3 + $0xe0] sm:$0xff]
  %v1172 = vld [vmem:[%s3 + $0xe8] sm:$0xff]
  %v1173 = vld [vmem:[%s3 + $0xf0] sm:$0xff]
  %v1174 = vld [vmem:[%s3 + $0xf8] sm:$0xff]
  %v1175 = vlaneseq
  %v1176 = vshrl.u32 %v1175, 7
  %v1177 = vsub.s32 0, %v1176
  %v1178 = vrot.slane %v48, %v1177
  %1179 = vmatprep.subr.mxu0 0.0
  %1180 = vmatpush1.msra.mxu0 %v1158
  %1181 = vmatprep.subr.mxu0 0.0
  %1182 = vmatpush1.msra.mxu0 %v1157
  %1183 = vmatprep.subr.mxu0 0.0
  %1184 = vmatpush1.msra.mxu0 %v1156
  %1185 = vmatprep.subr.mxu0 0.0
  %1186 = vmatpush1.msra.mxu0 %v1155
  %1187 = vmatprep.subr.mxu0 0.0
  %1188 = vmatpush1.msra.mxu0 %v1154
  %1189 = vmatprep.subr.mxu0 0.0
  %1190 = vmatpush1.msra.mxu0 %v1153
  %1191 = vmatprep.subr.mxu0 0.0
  %1192 = vmatpush1.msra.mxu0 %v1152
  %1193 = vmatprep.subr.mxu0 0.0
  %1194 = vmatpush1.msra.mxu0 %v1151
  %1195 = vmatprep.subr.mxu0 0.0
  %1196 = vmatpush1.msra.mxu0 %v1150
  %1197 = vmatprep.subr.mxu0 0.0
  %1198 = vmatpush1.msra.mxu0 %v1149
  %1199 = vmatprep.subr.mxu0 0.0
  %1200 = vmatpush1.msra.mxu0 %v1148
  %1201 = vmatprep.subr.mxu0 0.0
  %1202 = vmatpush1.msra.mxu0 %v1147
  %1203 = vmatprep.subr.mxu0 0.0
  %1204 = vmatpush1.msra.mxu0 %v1146
  %1205 = vmatprep.subr.mxu0 0.0
  %1206 = vmatpush1.msra.mxu0 %v1145
  %1207 = vmatprep.subr.mxu0 0.0
  %1208 = vmatpush1.msra.mxu0 %v1144
  %1209 = vmatprep.subr.mxu0 0.0
  %1210 = vmatpush1.msra.mxu0 %v1143
  %1211 = vmatprep.subr.mxu0 0.0
  %1212 = vmatpush2.msra.mxu0 %v1174
  %1213 = vmatprep.subr.mxu0 0.0
  %1214 = vmatpush2.msra.mxu0 %v1173
  %1215 = vmatprep.subr.mxu0 0.0
  %1216 = vmatpush2.msra.mxu0 %v1172
  %1217 = vmatprep.subr.mxu0 0.0
  %1218 = vmatpush2.msra.mxu0 %v1171
  %1219 = vmatprep.subr.mxu0 0.0
  %1220 = vmatpush2.msra.mxu0 %v1170
  %1221 = vmatprep.subr.mxu0 0.0
  %1222 = vmatpush2.msra.mxu0 %v1169
  %1223 = vmatprep.subr.mxu0 0.0
  %1224 = vmatpush2.msra.mxu0 %v1168
  %1225 = vmatprep.subr.mxu0 0.0
  %1226 = vmatpush2.msra.mxu0 %v1167
  %1227 = vmatprep.subr.mxu0 0.0
  %1228 = vmatpush2.msra.mxu0 %v1166
  %1229 = vmatprep.subr.mxu0 0.0
  %1230 = vmatpush2.msra.mxu0 %v1165
  %1231 = vmatprep.subr.mxu0 0.0
  %1232 = vmatpush2.msra.mxu0 %v1164
  %1233 = vmatprep.subr.mxu0 0.0
  %1234 = vmatpush2.msra.mxu0 %v1163
  %1235 = vmatprep.subr.mxu0 0.0
  %1236 = vmatpush2.msra.mxu0 %v1162
  %1237 = vmatprep.subr.mxu0 0.0
  %1238 = vmatpush2.msra.mxu0 %v1161
  %1239 = vmatprep.subr.mxu0 0.0
  %1240 = vmatpush2.msra.mxu0 %v1160
  %1241 = vmatprep.subr.mxu0 0.0
  %1242 = vmatpush2.msra.mxu0 %v1159
  %1243 = vmatprep.mubr.f32.mxu0 %v1142
  %1244 = vmatmul.mubr.f32.gmra.mxu0 %v1139
  %v1245 = vpop.f32.mrf.mxu0
  %v1246 = vadd.f32 %v1178, %v1245
  %v1247 = vpop.f32.mrf.mxu0
  %1248 = vdwg.mxu0
  %vm1249 = vcmask 39936
  %v1250 = vsel %vm1249, %v1246, -inf
  %1251 = vmax.xlane.f32.xlu0 %v1250
  %v1252 = vpop.xlane.xlu0 %1251
  %v1253 = vsub.f32 %v1246, %v1252
  %v1254 = vmul.f32 %v1253, 1.442695
  %v1255 = vpow.pop %v1254
  %v1256 = vsel %vm1249, %v1255, 0.0
  %1257 = vadd.xlane.f32.xlu0 %v1256
  %v1258 = vpop.xlane.xlu0 %1257
  %v1259 = vrcp.pop %v1258
  %v1260 = vmul.f32 %v1255, %v1259
  %1261 = vst.msk [vmem:[%s4] sm:$0xff] %vm1249, %v1260
  // Predicated region
  $region18: #{rel_classify_forward.1} parent=0 // pred_check
    _
  $region19: #{rel_classify_forward.1} parent=0 // pred_check_branch
    %1263 = sbr.rel (0) target = $region21
  $region20: #{rel_classify_forward.1} parent=0 // pred_region
    _
  $region21: #{rel_classify_forward.1} parent=0 // pred_fallthru
    _
  // Predicated region
  $region22: #{rel_classify_forward.1} parent=0 // pred_check
    _
  $region23: #{rel_classify_forward.1} parent=0 // pred_check_branch
    %1265 = sbr.rel (0) target = $region25
  $region24: #{rel_classify_forward.1} parent=0 // pred_region
    _
  $region25: #{rel_classify_forward.1} parent=0 // pred_fallthru
    _

</llo_original>
